<compile_context>
chip_gen: v7x
topology: tpu7x:2x2x1
jax: 0.10.0
libtpu: 0.0.40
codegen_flags: <defaults>
</compile_context>

<pallas_src>
import jax
import jax.numpy as jnp
from jax.experimental import pallas as pl
from jax.experimental.pallas import tpu as pltpu

EPS = 1e-5            # torch.nn.BatchNorm1d default eps
LEAKY_SLOPE = 0.01    # torch.nn.LeakyReLU default negative_slope


def _round_up(n, m):
    return ((n + m - 1) // m) * m


def dnn_kernel(x_ref, w0_ref, b0_ref, w1_ref, b1_ref,
               w2_ref, b2_ref, w3_ref, b3_ref, o_ref):
    # BatchNorm has been folded into (w0, b0) by the wrapper, so the first op
    # on the [TILE_B, D] tile is already the input linear layer.
    h = jnp.dot(x_ref[...], w0_ref[...],
                preferred_element_type=jnp.float32) + b0_ref[...]
    h = h * jax.nn.sigmoid(h)                          # SiLU (Dropout p=0 == identity)

    h = jnp.dot(h, w1_ref[...], preferred_element_type=jnp.float32) + b1_ref[...]
    h = jnp.where(h >= 0, h, LEAKY_SLOPE * h)          # LeakyReLU

    h = jnp.dot(h, w2_ref[...], preferred_element_type=jnp.float32) + b2_ref[...]
    h = jnp.where(h >= 0, h, LEAKY_SLOPE * h)          # LeakyReLU

    # Final Linear(16, 1): only one useful output column -> do it on the
    # VPU/XLU (broadcast-mul + lane reduce) instead of an almost-empty MXU op.
    z = jnp.sum(h * w3_ref[...], axis=-1, keepdims=True) + b3_ref[...]
    o_ref[...] = jax.nn.sigmoid(z)


def init_params(key, input_dim, layers=(16, 32, 16)):
    """Deterministic init mimicking torch defaults (uniform(-1/sqrt(fan_in), ...))."""
    dims = [input_dim] + list(layers) + [1]
    params = [
        jnp.ones((input_dim,), jnp.float32),    # batchnorm gamma
        jnp.zeros((input_dim,), jnp.float32),   # batchnorm beta
    ]
    for i in range(len(dims) - 1):
        key, kw, kb = jax.random.split(key, 3)
        fan_in = dims[i]
        bound = 1.0 / (fan_in ** 0.5)
        w = jax.random.uniform(kw, (dims[i], dims[i + 1]), jnp.float32, -bound, bound)
        b = jax.random.uniform(kb, (1, dims[i + 1]), jnp.float32, -bound, bound)
        params += [w, b]
    return tuple(params)


def dnn_forward(x, params, *, tile_b=1024):
    """Full forward pass: BN stats hoisted/folded in the wrapper, rest fused in one kernel."""
    gamma, beta, w0, b0, w1, b1, w2, b2, w3, b3 = params
    b, d = x.shape

    # --- BatchNorm1d (training-mode batch statistics, biased variance), folded into L0 ---
    mean = jnp.mean(x, axis=0)
    var = jnp.mean((x - mean) ** 2, axis=0)
    scale = gamma * jax.lax.rsqrt(var + EPS)            # (D,)
    shift = beta - mean * scale                         # (D,)
    w0_eff = w0 * scale[:, None]                        # (D, H0)
    b0_eff = b0 + shift @ w0                            # (1, H0)

    w3_row = w3.reshape(1, -1)                          # (1, H_last) for VPU final layer

    # --- batch tiling (pad B up to a multiple of the tile; padded rows sliced off) ---
    tile_b = min(tile_b, _round_up(b, 8))
    tile_b = _round_up(tile_b, 8)
    n_tiles = -(-b // tile_b)
    b_pad = n_tiles * tile_b
    if b_pad != b:
        x = jnp.pad(x, ((0, b_pad - b), (0, 0)))

    def const_spec(arr):
        # weights/biases: one block == whole array, same block every grid step
        return pl.BlockSpec(arr.shape, lambda i: (0, 0))

    # Explicit VMEM budget: 2x double-buffered x tile + resident weights + headroom.
    x_tile_bytes = tile_b * d * 4
    vmem_limit = min(max(6 * x_tile_bytes + (2 << 20), 4 << 20), 48 << 20)

    out = pl.pallas_call(
        dnn_kernel,
        grid=(n_tiles,),
        in_specs=[
            pl.BlockSpec((tile_b, d), lambda i: (i, 0)),   # x tile, pipelined
            const_spec(w0_eff), const_spec(b0_eff),
            const_spec(w1), const_spec(b1),
            const_spec(w2), const_spec(b2),
            const_spec(w3_row), const_spec(b3),
        ],
        out_specs=pl.BlockSpec((tile_b, 1), lambda i: (i, 0)),
        out_shape=jax.ShapeDtypeStruct((b_pad, 1), jnp.float32),
        compiler_params=pltpu.CompilerParams(
            dimension_semantics=("parallel",),      # shard batch tiles across TCs (v7x)
            vmem_limit_bytes=vmem_limit,
        ),
    )(x, w0_eff, b0_eff, w1, b1, w2, b2, w3_row, b3)

    return out[:b]


def dnn_reference(x, params):
    """Plain-JAX reference of the same forward (unfolded BN), for correctness check."""
    gamma, beta, w0, b0, w1, b1, w2, b2, w3, b3 = params
    mean = jnp.mean(x, axis=0, keepdims=True)
    var = jnp.mean((x - mean) ** 2, axis=0, keepdims=True)
    h = (x - mean) / jnp.sqrt(var + EPS) * gamma + beta
    h = h @ w0 + b0
    h = h * jax.nn.sigmoid(h)
    h = h @ w1 + b1
    h = jnp.where(h >= 0, h, LEAKY_SLOPE * h)
    h = h @ w2 + b2
    h = jnp.where(h >= 0, h, LEAKY_SLOPE * h)
    h = h @ w3 + b3
    return jax.nn.sigmoid(h)


if __name__ == "__main__":
    key = jax.random.PRNGKey(0)
    k_x, k_p = jax.random.split(key)

    batch = 600          # small, but exercises multi-tile grid + padded last tile
    input_dim = 32
    x = jax.random.normal(k_x, (batch, input_dim), jnp.float32)
    params = init_params(k_p, input_dim, layers=(16, 32, 16))

    out = dnn_forward(x, params, tile_b=256)
    out = jax.block_until_ready(out)

    ref = dnn_reference(x, params)
    assert out.shape == (batch, 1)
    assert jnp.allclose(out, ref, atol=1e-5, rtol=1e-5), "mismatch vs JAX reference"

    print("KERNEL_OK")
</pallas_src>

<mosaic_0001>
module attributes {stable_mosaic.version = 11 : i64} {
  func.func @dnn_kernel(%arg0: i32, %arg1: memref<256x32xf32, #tpu.memory_space<vmem>>, %arg2: memref<32x16xf32, #tpu.memory_space<vmem>>, %arg3: memref<1x16xf32, #tpu.memory_space<vmem>>, %arg4: memref<16x32xf32, #tpu.memory_space<vmem>>, %arg5: memref<1x32xf32, #tpu.memory_space<vmem>>, %arg6: memref<32x16xf32, #tpu.memory_space<vmem>>, %arg7: memref<1x16xf32, #tpu.memory_space<vmem>>, %arg8: memref<1x16xf32, #tpu.memory_space<vmem>>, %arg9: memref<1x1xf32, #tpu.memory_space<vmem>>, %arg10: memref<256x1xf32, #tpu.memory_space<vmem>>) attributes {dimension_semantics = [#tpu.dimension_semantics<parallel>], iteration_bounds = array<i64: 3>, scalar_prefetch = 0 : i64, scratch_operands = 0 : i64, tpu.core_type = #tpu.core_type<tc>, window_params = [{transform_indices = @transform_0, window_bounds = array<i64: 256, 32>}, {pipeline_mode = #tpu.pipeline_mode<synchronous>, transform_indices = @transform_1, window_bounds = array<i64: 32, 16>}, {pipeline_mode = #tpu.pipeline_mode<synchronous>, transform_indices = @transform_2, window_bounds = array<i64: 1, 16>}, {pipeline_mode = #tpu.pipeline_mode<synchronous>, transform_indices = @transform_3, window_bounds = array<i64: 16, 32>}, {pipeline_mode = #tpu.pipeline_mode<synchronous>, transform_indices = @transform_4, window_bounds = array<i64: 1, 32>}, {pipeline_mode = #tpu.pipeline_mode<synchronous>, transform_indices = @transform_5, window_bounds = array<i64: 32, 16>}, {pipeline_mode = #tpu.pipeline_mode<synchronous>, transform_indices = @transform_6, window_bounds = array<i64: 1, 16>}, {pipeline_mode = #tpu.pipeline_mode<synchronous>, transform_indices = @transform_7, window_bounds = array<i64: 1, 16>}, {pipeline_mode = #tpu.pipeline_mode<synchronous>, transform_indices = @transform_8, window_bounds = array<i64: 1, 1>}, {transform_indices = @transform_9, window_bounds = array<i64: 256, 1>}]} {
    %c0 = arith.constant 0 : index
    %c0_0 = arith.constant 0 : index
    %0 = vector.load %arg1[%c0, %c0_0] : memref<256x32xf32, #tpu.memory_space<vmem>>, vector<256x32xf32>
    %c0_1 = arith.constant 0 : index
    %c0_2 = arith.constant 0 : index
    %1 = vector.load %arg2[%c0_1, %c0_2] : memref<32x16xf32, #tpu.memory_space<vmem>>, vector<32x16xf32>
    %cst = arith.constant dense<0.000000e+00> : vector<256x16xf32>
    %2 = tpu.matmul %0, %1, %cst {dimension_numbers = #tpu.dot_dimension_numbers<[1], [0], [0], [1], [0, 0, 1, 1], [], []>} : vector<256x32xf32>, vector<32x16xf32>, vector<256x16xf32> -> vector<256x16xf32>
    %c0_3 = arith.constant 0 : index
    %c0_4 = arith.constant 0 : index
    %3 = vector.load %arg3[%c0_3, %c0_4] : memref<1x16xf32, #tpu.memory_space<vmem>>, vector<1x16xf32>
    %4 = vector.broadcast %3 : vector<1x16xf32> to vector<256x16xf32>
    %5 = arith.addf %2, %4 : vector<256x16xf32>
    %6 = arith.negf %5 : vector<256x16xf32>
    %7 = math.exp %6 : vector<256x16xf32>
    %cst_5 = arith.constant 1.000000e+00 : f32
    %8 = vector.broadcast %cst_5 : f32 to vector<256x16xf32>
    %9 = arith.addf %8, %7 : vector<256x16xf32>
    %10 = arith.divf %8, %9 : vector<256x16xf32>
    %11 = arith.mulf %5, %10 : vector<256x16xf32>
    %c0_6 = arith.constant 0 : index
    %c0_7 = arith.constant 0 : index
    %12 = vector.load %arg4[%c0_6, %c0_7] : memref<16x32xf32, #tpu.memory_space<vmem>>, vector<16x32xf32>
    %cst_8 = arith.constant dense<0.000000e+00> : vector<256x32xf32>
    %13 = tpu.matmul %11, %12, %cst_8 {dimension_numbers = #tpu.dot_dimension_numbers<[1], [0], [0], [1], [0, 0, 1, 1], [], []>} : vector<256x16xf32>, vector<16x32xf32>, vector<256x32xf32> -> vector<256x32xf32>
    %c0_9 = arith.constant 0 : index
    %c0_10 = arith.constant 0 : index
    %14 = vector.load %arg5[%c0_9, %c0_10] : memref<1x32xf32, #tpu.memory_space<vmem>>, vector<1x32xf32>
    %15 = vector.broadcast %14 : vector<1x32xf32> to vector<256x32xf32>
    %16 = arith.addf %13, %15 : vector<256x32xf32>
    %cst_11 = arith.constant 0.000000e+00 : f32
    %17 = vector.broadcast %cst_11 : f32 to vector<256x32xf32>
    %18 = arith.cmpf oge, %16, %17 : vector<256x32xf32>
    %cst_12 = arith.constant 0.00999999977 : f32
    %19 = vector.broadcast %cst_12 : f32 to vector<256x32xf32>
    %20 = arith.mulf %19, %16 : vector<256x32xf32>
    %21 = arith.select %18, %16, %20 : vector<256x32xi1>, vector<256x32xf32>
    %c0_13 = arith.constant 0 : index
    %c0_14 = arith.constant 0 : index
    %22 = vector.load %arg6[%c0_13, %c0_14] : memref<32x16xf32, #tpu.memory_space<vmem>>, vector<32x16xf32>
    %cst_15 = arith.constant dense<0.000000e+00> : vector<256x16xf32>
    %23 = tpu.matmul %21, %22, %cst_15 {dimension_numbers = #tpu.dot_dimension_numbers<[1], [0], [0], [1], [0, 0, 1, 1], [], []>} : vector<256x32xf32>, vector<32x16xf32>, vector<256x16xf32> -> vector<256x16xf32>
    %c0_16 = arith.constant 0 : index
    %c0_17 = arith.constant 0 : index
    %24 = vector.load %arg7[%c0_16, %c0_17] : memref<1x16xf32, #tpu.memory_space<vmem>>, vector<1x16xf32>
    %25 = vector.broadcast %24 : vector<1x16xf32> to vector<256x16xf32>
    %26 = arith.addf %23, %25 : vector<256x16xf32>
    %cst_18 = arith.constant 0.000000e+00 : f32
    %27 = vector.broadcast %cst_18 : f32 to vector<256x16xf32>
    %28 = arith.cmpf oge, %26, %27 : vector<256x16xf32>
    %cst_19 = arith.constant 0.00999999977 : f32
    %29 = vector.broadcast %cst_19 : f32 to vector<256x16xf32>
    %30 = arith.mulf %29, %26 : vector<256x16xf32>
    %31 = arith.select %28, %26, %30 : vector<256x16xi1>, vector<256x16xf32>
    %c0_20 = arith.constant 0 : index
    %c0_21 = arith.constant 0 : index
    %32 = vector.load %arg8[%c0_20, %c0_21] : memref<1x16xf32, #tpu.memory_space<vmem>>, vector<1x16xf32>
    %33 = vector.broadcast %32 : vector<1x16xf32> to vector<256x16xf32>
    %34 = arith.mulf %31, %33 : vector<256x16xf32>
    %cst_22 = arith.constant dense<0.000000e+00> : vector<256xf32>
    %35 = vector.multi_reduction <add>, %34, %cst_22 [1] : vector<256x16xf32> to vector<256xf32>
    %36 = vector.shape_cast %35 : vector<256xf32> to vector<256x1xf32>
    %c0_23 = arith.constant 0 : index
    %c0_24 = arith.constant 0 : index
    %37 = vector.load %arg9[%c0_23, %c0_24] : memref<1x1xf32, #tpu.memory_space<vmem>>, vector<1x1xf32>
    %38 = vector.broadcast %37 : vector<1x1xf32> to vector<256x1xf32>
    %39 = arith.addf %36, %38 : vector<256x1xf32>
    %40 = arith.negf %39 : vector<256x1xf32>
    %41 = math.exp %40 : vector<256x1xf32>
    %cst_25 = arith.constant 1.000000e+00 : f32
    %42 = vector.broadcast %cst_25 : f32 to vector<256x1xf32>
    %43 = arith.addf %42, %41 : vector<256x1xf32>
    %44 = arith.divf %42, %43 : vector<256x1xf32>
    %c0_26 = arith.constant 0 : index
    %c0_27 = arith.constant 0 : index
    %45 = vector.load %arg10[%c0_26, %c0_27] : memref<256x1xf32, #tpu.memory_space<vmem>>, vector<256x1xf32>
    tpu.vector_store %arg10[%c0_26, %c0_27], %44 {strides = array<i32>} : memref<256x1xf32, #tpu.memory_space<vmem>>, vector<256x1xf32>,
    return
  }
  func.func @transform_0(%arg0: i32) -> (i32, i32) {
    %c0_i32 = arith.constant 0 : i32
    %c0_i32_0 = arith.constant 0 : i32
    return %arg0, %c0_i32 : i32, i32
  }
  func.func @transform_1(%arg0: i32) -> (i32, i32) {
    %c0_i32 = arith.constant 0 : i32
    %c0_i32_0 = arith.constant 0 : i32
    %c0_i32_1 = arith.constant 0 : i32
    return %c0_i32, %c0_i32_0 : i32, i32
  }
  func.func @transform_2(%arg0: i32) -> (i32, i32) {
    %c0_i32 = arith.constant 0 : i32
    %c0_i32_0 = arith.constant 0 : i32
    %c0_i32_1 = arith.constant 0 : i32
    return %c0_i32, %c0_i32_0 : i32, i32
  }
  func.func @transform_3(%arg0: i32) -> (i32, i32) {
    %c0_i32 = arith.constant 0 : i32
    %c0_i32_0 = arith.constant 0 : i32
    %c0_i32_1 = arith.constant 0 : i32
    return %c0_i32, %c0_i32_0 : i32, i32
  }
  func.func @transform_4(%arg0: i32) -> (i32, i32) {
    %c0_i32 = arith.constant 0 : i32
    %c0_i32_0 = arith.constant 0 : i32
    %c0_i32_1 = arith.constant 0 : i32
    return %c0_i32, %c0_i32_0 : i32, i32
  }
  func.func @transform_5(%arg0: i32) -> (i32, i32) {
    %c0_i32 = arith.constant 0 : i32
    %c0_i32_0 = arith.constant 0 : i32
    %c0_i32_1 = arith.constant 0 : i32
    return %c0_i32, %c0_i32_0 : i32, i32
  }
  func.func @transform_6(%arg0: i32) -> (i32, i32) {
    %c0_i32 = arith.constant 0 : i32
    %c0_i32_0 = arith.constant 0 : i32
    %c0_i32_1 = arith.constant 0 : i32
    return %c0_i32, %c0_i32_0 : i32, i32
  }
  func.func @transform_7(%arg0: i32) -> (i32, i32) {
    %c0_i32 = arith.constant 0 : i32
    %c0_i32_0 = arith.constant 0 : i32
    %c0_i32_1 = arith.constant 0 : i32
    return %c0_i32, %c0_i32_0 : i32, i32
  }
  func.func @transform_8(%arg0: i32) -> (i32, i32) {
    %c0_i32 = arith.constant 0 : i32
    %c0_i32_0 = arith.constant 0 : i32
    %c0_i32_1 = arith.constant 0 : i32
    return %c0_i32, %c0_i32_0 : i32, i32
  }
  func.func @transform_9(%arg0: i32) -> (i32, i32) {
    %c0_i32 = arith.constant 0 : i32
    %c0_i32_0 = arith.constant 0 : i32
    return %arg0, %c0_i32 : i32, i32
  }
}

</mosaic_0001>

<llo_original>
// kernel: tpu_custom_call.1
$region0: #{tpu_custom_call.1}
  #allocation0 [shape = 'u32[]', space=smem, size = 0x4, offset = 0x4, fixed_abs, tag = 'smem constant byte address 0x4 - core index']
  #allocation1 [shape = 'u32[144,128]{1,0:T(1,128)}', space=vmem, size = 0x12000, scoped, tag = 'internal scratch']
  #allocation2 [shape = 'f32[1,1]{1,0:T(1,128)S(1)}', space=vmem, size = 0x200, scoped, tag = 'scoped memory for tpu_custom_call.1']
  %s0 = inlined_call_operand.vmem [shape: f32[768,32], index: 0, kind: input, shape index: {}]
  %s1 = inlined_call_operand.vmem [shape: f32[32,16], index: 1, kind: input, shape index: {}]
  %s2 = inlined_call_operand.vmem [shape: f32[1,16], index: 2, kind: input, shape index: {}]
  %s3 = inlined_call_operand.vmem [shape: f32[16,32], index: 3, kind: input, shape index: {}]
  %s4 = inlined_call_operand.vmem [shape: f32[1,32], index: 4, kind: input, shape index: {}]
  %s5 = inlined_call_operand.vmem [shape: f32[32,16], index: 5, kind: input, shape index: {}]
  %s6 = inlined_call_operand.vmem [shape: f32[1,16], index: 6, kind: input, shape index: {}]
  %s7 = inlined_call_operand.vmem [shape: f32[1,16], index: 7, kind: input, shape index: {}]
  %s8 = inlined_call_operand.<no memory space> [shape: f32[1,1], index: 8, kind: input, shape index: {}]
  %s9 = inlined_call_operand.vmem [shape: f32[768,1], index: 9, kind: output, shape index: {}]
  %s10 = sld [smem:[#allocation0]]
  $region69: #{tpu_custom_call.1} parent=0
    _
  %s12 = ssub.s32 1, %s10
  %s13 = scalar_select 0, %s12, %s10
  %v14 = vstv %s8
  %15 = vst [vmem:[#allocation2] sm:$0x1] %v14
  loop: start=0, step=1, limit=5
  $region2: #{tpu_custom_call.1} parent=0 // loop_pre_header
    _
  $region3: #{tpu_custom_call.1} parent=0 // loop_header
    %s17 = sphi 0, %s21
    %p18 = scmp.ge.s32.totalorder %s17, 5
    %s27 = sphi 0, %s29
    %s30 = sphi 0, %s27
    %s31 = sphi 0, %s30
    %s47 = sphi 0, %s31
    %s51 = sphi 0, %s51
    %s53 = sphi 0, %s51
    %s54 = sphi 0, %s53
    %s68 = sphi 0, %s54
    %s72 = sphi 0, %s72
    %s74 = sphi 0, %s72
    %s75 = sphi 0, %s74
    %s89 = sphi 0, %s75
    %s93 = sphi 0, %s93
    %s95 = sphi 0, %s93
    %s96 = sphi 0, %s95
    %s110 = sphi 0, %s96
    %s114 = sphi 0, %s114
    %s116 = sphi 0, %s114
    %s117 = sphi 0, %s116
    %s131 = sphi 0, %s117
    %s135 = sphi 0, %s135
    %s137 = sphi 0, %s135
    %s138 = sphi 0, %s137
    %s152 = sphi 0, %s138
    %s156 = sphi 0, %s156
    %s158 = sphi 0, %s156
    %s159 = sphi 0, %s158
    %s173 = sphi 0, %s159
    %s177 = sphi 0, %s177
    %s179 = sphi 0, %s177
    %s180 = sphi 0, %s179
    %s194 = sphi 0, %s180
    %s198 = sphi 0, %s198
    %s200 = sphi 0, %s198
    %s201 = sphi 0, %s200
    %s215 = sphi 0, %s201
    %s221 = sphi 0, %s223
    %s224 = sphi 0, %s221
    %s225 = sphi 0, %s224
    %s241 = sphi 0, %s225
  $region4: #{tpu_custom_call.1} parent=0 // loop_header_branch
    %20 = sbr.rel (%p18) target = $region8
  $region5: #{tpu_custom_call.1} parent=0 // loop_body
    %s22 = ssub.s32 %s17, 1
    %s23 = ssub.s32 %s17, 2
    %s24 = sadd.s32 %s17, 1
    %s25 = ssub.s32 %s17, %s24
    %p26 = scmp.eq.s32.totalorder %s25, 0
    %s28 = sadd.s32 %s27, 1
    %s29 = scalar_select %p26, %s27, %s28
    %p32 = pneg %p26
    %p33 = scmp.eq.s32.totalorder %s17, 2
    %p34 = por %p32, %p33
    %p35 = scmp.ne.s32.totalorder %s27, %s30
    %p36 = scmp.eq.s32.totalorder %s17, 0
    %p37 = por %p35, %p36
    %p38 = scmp.ne.s32.totalorder %s27, %s30
    %p39 = scmp.eq.s32.totalorder %s22, 2
    %p40 = por %p38, %p39
    %p41 = scmp.ne.s32.totalorder %s30, %s31
    %p42 = scmp.eq.s32.totalorder %s22, 0
    %p43 = por %p41, %p42
    %p44 = scmp.ne.s32.totalorder %s30, %s31
    %p45 = scmp.eq.s32.totalorder %s23, 2
    %p46 = por %p44, %p45
    %p48 = scmp.ne.s32.totalorder %s31, %s47
    %p49 = scmp.eq.s32.totalorder %s23, 0
    %p50 = por %p48, %p49
    %s52 = sadd.s32 %s51, 1
    %p55 = scmp.eq.s32.totalorder %s17, 2
    %p56 = scmp.ne.s32.totalorder %s51, %s53
    %p57 = scmp.eq.s32.totalorder %s17, 0
    %p58 = por %p56, %p57
    %p59 = scmp.ne.s32.totalorder %s51, %s53
    %p60 = scmp.eq.s32.totalorder %s22, 2
    %p61 = por %p59, %p60
    %p62 = scmp.ne.s32.totalorder %s53, %s54
    %p63 = scmp.eq.s32.totalorder %s22, 0
    %p64 = por %p62, %p63
    %p65 = scmp.ne.s32.totalorder %s53, %s54
    %p66 = scmp.eq.s32.totalorder %s23, 2
    %p67 = por %p65, %p66
    %p69 = scmp.ne.s32.totalorder %s54, %s68
    %p70 = scmp.eq.s32.totalorder %s23, 0
    %p71 = por %p69, %p70
    %s73 = sadd.s32 %s72, 1
    %p76 = scmp.eq.s32.totalorder %s17, 2
    %p77 = scmp.ne.s32.totalorder %s72, %s74
    %p78 = scmp.eq.s32.totalorder %s17, 0
    %p79 = por %p77, %p78
    %p80 = scmp.ne.s32.totalorder %s72, %s74
    %p81 = scmp.eq.s32.totalorder %s22, 2
    %p82 = por %p80, %p81
    %p83 = scmp.ne.s32.totalorder %s74, %s75
    %p84 = scmp.eq.s32.totalorder %s22, 0
    %p85 = por %p83, %p84
    %p86 = scmp.ne.s32.totalorder %s74, %s75
    %p87 = scmp.eq.s32.totalorder %s23, 2
    %p88 = por %p86, %p87
    %p90 = scmp.ne.s32.totalorder %s75, %s89
    %p91 = scmp.eq.s32.totalorder %s23, 0
    %p92 = por %p90, %p91
    %s94 = sadd.s32 %s93, 1
    %p97 = scmp.eq.s32.totalorder %s17, 2
    %p98 = scmp.ne.s32.totalorder %s93, %s95
    %p99 = scmp.eq.s32.totalorder %s17, 0
    %p100 = por %p98, %p99
    %p101 = scmp.ne.s32.totalorder %s93, %s95
    %p102 = scmp.eq.s32.totalorder %s22, 2
    %p103 = por %p101, %p102
    %p104 = scmp.ne.s32.totalorder %s95, %s96
    %p105 = scmp.eq.s32.totalorder %s22, 0
    %p106 = por %p104, %p105
    %p107 = scmp.ne.s32.totalorder %s95, %s96
    %p108 = scmp.eq.s32.totalorder %s23, 2
    %p109 = por %p107, %p108
    %p111 = scmp.ne.s32.totalorder %s96, %s110
    %p112 = scmp.eq.s32.totalorder %s23, 0
    %p113 = por %p111, %p112
    %s115 = sadd.s32 %s114, 1
    %p118 = scmp.eq.s32.totalorder %s17, 2
    %p119 = scmp.ne.s32.totalorder %s114, %s116
    %p120 = scmp.eq.s32.totalorder %s17, 0
    %p121 = por %p119, %p120
    %p122 = scmp.ne.s32.totalorder %s114, %s116
    %p123 = scmp.eq.s32.totalorder %s22, 2
    %p124 = por %p122, %p123
    %p125 = scmp.ne.s32.totalorder %s116, %s117
    %p126 = scmp.eq.s32.totalorder %s22, 0
    %p127 = por %p125, %p126
    %p128 = scmp.ne.s32.totalorder %s116, %s117
    %p129 = scmp.eq.s32.totalorder %s23, 2
    %p130 = por %p128, %p129
    %p132 = scmp.ne.s32.totalorder %s117, %s131
    %p133 = scmp.eq.s32.totalorder %s23, 0
    %p134 = por %p132, %p133
    %s136 = sadd.s32 %s135, 1
    %p139 = scmp.eq.s32.totalorder %s17, 2
    %p140 = scmp.ne.s32.totalorder %s135, %s137
    %p141 = scmp.eq.s32.totalorder %s17, 0
    %p142 = por %p140, %p141
    %p143 = scmp.ne.s32.totalorder %s135, %s137
    %p144 = scmp.eq.s32.totalorder %s22, 2
    %p145 = por %p143, %p144
    %p146 = scmp.ne.s32.totalorder %s137, %s138
    %p147 = scmp.eq.s32.totalorder %s22, 0
    %p148 = por %p146, %p147
    %p149 = scmp.ne.s32.totalorder %s137, %s138
    %p150 = scmp.eq.s32.totalorder %s23, 2
    %p151 = por %p149, %p150
    %p153 = scmp.ne.s32.totalorder %s138, %s152
    %p154 = scmp.eq.s32.totalorder %s23, 0
    %p155 = por %p153, %p154
    %s157 = sadd.s32 %s156, 1
    %p160 = scmp.eq.s32.totalorder %s17, 2
    %p161 = scmp.ne.s32.totalorder %s156, %s158
    %p162 = scmp.eq.s32.totalorder %s17, 0
    %p163 = por %p161, %p162
    %p164 = scmp.ne.s32.totalorder %s156, %s158
    %p165 = scmp.eq.s32.totalorder %s22, 2
    %p166 = por %p164, %p165
    %p167 = scmp.ne.s32.totalorder %s158, %s159
    %p168 = scmp.eq.s32.totalorder %s22, 0
    %p169 = por %p167, %p168
    %p170 = scmp.ne.s32.totalorder %s158, %s159
    %p171 = scmp.eq.s32.totalorder %s23, 2
    %p172 = por %p170, %p171
    %p174 = scmp.ne.s32.totalorder %s159, %s173
    %p175 = scmp.eq.s32.totalorder %s23, 0
    %p176 = por %p174, %p175
    %s178 = sadd.s32 %s177, 1
    %p181 = scmp.eq.s32.totalorder %s17, 2
    %p182 = scmp.ne.s32.totalorder %s177, %s179
    %p183 = scmp.eq.s32.totalorder %s17, 0
    %p184 = por %p182, %p183
    %p185 = scmp.ne.s32.totalorder %s177, %s179
    %p186 = scmp.eq.s32.totalorder %s22, 2
    %p187 = por %p185, %p186
    %p188 = scmp.ne.s32.totalorder %s179, %s180
    %p189 = scmp.eq.s32.totalorder %s22, 0
    %p190 = por %p188, %p189
    %p191 = scmp.ne.s32.totalorder %s179, %s180
    %p192 = scmp.eq.s32.totalorder %s23, 2
    %p193 = por %p191, %p192
    %p195 = scmp.ne.s32.totalorder %s180, %s194
    %p196 = scmp.eq.s32.totalorder %s23, 0
    %p197 = por %p195, %p196
    %s199 = sadd.s32 %s198, 1
    %p202 = scmp.eq.s32.totalorder %s17, 2
    %p203 = scmp.ne.s32.totalorder %s198, %s200
    %p204 = scmp.eq.s32.totalorder %s17, 0
    %p205 = por %p203, %p204
    %p206 = scmp.ne.s32.totalorder %s198, %s200
    %p207 = scmp.eq.s32.totalorder %s22, 2
    %p208 = por %p206, %p207
    %p209 = scmp.ne.s32.totalorder %s200, %s201
    %p210 = scmp.eq.s32.totalorder %s22, 0
    %p211 = por %p209, %p210
    %p212 = scmp.ne.s32.totalorder %s200, %s201
    %p213 = scmp.eq.s32.totalorder %s23, 2
    %p214 = por %p212, %p213
    %p216 = scmp.ne.s32.totalorder %s201, %s215
    %p217 = scmp.eq.s32.totalorder %s23, 0
    %p218 = por %p216, %p217
    %s219 = ssub.s32 %s17, %s24
    %p220 = scmp.eq.s32.totalorder %s219, 0
    %s222 = sadd.s32 %s221, 1
    %s223 = scalar_select %p220, %s221, %s222
    %p226 = pneg %p220
    %p227 = scmp.eq.s32.totalorder %s17, 2
    %p228 = por %p226, %p227
    %p229 = scmp.ne.s32.totalorder %s221, %s224
    %p230 = scmp.eq.s32.totalorder %s17, 0
    %p231 = por %p229, %p230
    %p232 = scmp.ne.s32.totalorder %s221, %s224
    %p233 = scmp.eq.s32.totalorder %s22, 2
    %p234 = por %p232, %p233
    %p235 = scmp.ne.s32.totalorder %s224, %s225
    %p236 = scmp.eq.s32.totalorder %s22, 0
    %p237 = por %p235, %p236
    %p238 = scmp.ne.s32.totalorder %s224, %s225
    %p239 = scmp.eq.s32.totalorder %s23, 2
    %p240 = por %p238, %p239
    %p242 = scmp.ne.s32.totalorder %s225, %s241
    %p243 = scmp.eq.s32.totalorder %s23, 0
    %p244 = por %p242, %p243
    %p245 = scmp.le.s32.totalorder 1, %s17
    %p246 = scmp.lt.s32.totalorder %s17, 4
    %p247 = pnand %p245, %p246
    %p248 = pneg %p247
    // Predicated region
    $region9: #{tpu_custom_call.1} parent=5 // pred_check
      _
    $region10: #{tpu_custom_call.1} parent=5 // pred_check_branch
      %250 = sbr.rel (%p247) target = $region12
    $region11: #{tpu_custom_call.1} parent=5 // pred_region
      %s251 = ssub.s32 %s17, 1
      // Predicated region
      $region13: #{tpu_custom_call.1} parent=11 // pred_check
        %p252 = pneg %p64
      $region14: #{tpu_custom_call.1} parent=11 // pred_check_branch
        %254 = sbr.rel (%p252) target = $region16
      $region15: #{tpu_custom_call.1} parent=11 // pred_region
        _
      $region16: #{tpu_custom_call.1} parent=11 // pred_fallthru
        _
      // Predicated region
      $region17: #{tpu_custom_call.1} parent=11 // pred_check
        %p255 = pneg %p85
      $region18: #{tpu_custom_call.1} parent=11 // pred_check_branch
        %257 = sbr.rel (%p255) target = $region20
      $region19: #{tpu_custom_call.1} parent=11 // pred_region
        _
      $region20: #{tpu_custom_call.1} parent=11 // pred_fallthru
        _
      // Predicated region
      $region21: #{tpu_custom_call.1} parent=11 // pred_check
        %p258 = pneg %p106
      $region22: #{tpu_custom_call.1} parent=11 // pred_check_branch
        %260 = sbr.rel (%p258) target = $region24
      $region23: #{tpu_custom_call.1} parent=11 // pred_region
        _
      $region24: #{tpu_custom_call.1} parent=11 // pred_fallthru
        _
      // Predicated region
      $region25: #{tpu_custom_call.1} parent=11 // pred_check
        %p261 = pneg %p127
      $region26: #{tpu_custom_call.1} parent=11 // pred_check_branch
        %263 = sbr.rel (%p261) target = $region28
      $region27: #{tpu_custom_call.1} parent=11 // pred_region
        _
      $region28: #{tpu_custom_call.1} parent=11 // pred_fallthru
        _
      // Predicated region
      $region29: #{tpu_custom_call.1} parent=11 // pred_check
        %p264 = pneg %p148
      $region30: #{tpu_custom_call.1} parent=11 // pred_check_branch
        %266 = sbr.rel (%p264) target = $region32
      $region31: #{tpu_custom_call.1} parent=11 // pred_region
        _
      $region32: #{tpu_custom_call.1} parent=11 // pred_fallthru
        _
      // Predicated region
      $region33: #{tpu_custom_call.1} parent=11 // pred_check
        %p267 = pneg %p169
      $region34: #{tpu_custom_call.1} parent=11 // pred_check_branch
        %269 = sbr.rel (%p267) target = $region36
      $region35: #{tpu_custom_call.1} parent=11 // pred_region
        _
      $region36: #{tpu_custom_call.1} parent=11 // pred_fallthru
        _
      // Predicated region
      $region37: #{tpu_custom_call.1} parent=11 // pred_check
        %p270 = pneg %p190
      $region38: #{tpu_custom_call.1} parent=11 // pred_check_branch
        %272 = sbr.rel (%p270) target = $region40
      $region39: #{tpu_custom_call.1} parent=11 // pred_region
        _
      $region40: #{tpu_custom_call.1} parent=11 // pred_fallthru
        _
      // Predicated region
      $region41: #{tpu_custom_call.1} parent=11 // pred_check
        %p273 = pneg %p211
      $region42: #{tpu_custom_call.1} parent=11 // pred_check_branch
        %275 = sbr.rel (%p273) target = $region44
      $region43: #{tpu_custom_call.1} parent=11 // pred_region
        _
      $region44: #{tpu_custom_call.1} parent=11 // pred_fallthru
        _
    $region12: #{tpu_custom_call.1} parent=5 // pred_fallthru
      _
    %p276 = scmp.lt.s32.totalorder %s17, 3
    // Predicated region
    $region45: #{tpu_custom_call.1} parent=5 // pred_check
      %p277 = pneg %p276
    $region46: #{tpu_custom_call.1} parent=5 // pred_check_branch
      %279 = sbr.rel (%p277) target = $region48
    $region47: #{tpu_custom_call.1} parent=5 // pred_region
      // Predicated region
      $region49: #{tpu_custom_call.1} parent=47 // pred_check
        %p280 = pneg %p37
      $region50: #{tpu_custom_call.1} parent=47 // pred_check_branch
        %282 = sbr.rel (%p280) target = $region52
      $region51: #{tpu_custom_call.1} parent=47 // pred_region
        %s283 = smul.u32 32, %s17
        %p284 = scmp.lt.s32.totalorder %s283, 95
        %s285 = scalar_select %p284, %s283, 95
        %s286 = smul.addr %s285, 8
        %s287 = scalar_lea.vmem %s0, %s286
        %s288 = smul.u32 32, %s17
      $region52: #{tpu_custom_call.1} parent=47 // pred_fallthru
        _
    $region48: #{tpu_custom_call.1} parent=5 // pred_fallthru
      _
    %p289 = scmp.le.s32.totalorder 1, %s17
    %p290 = scmp.lt.s32.totalorder %s17, 4
    %p291 = pnand %p289, %p290
    %p292 = pneg %p291
    // Predicated region
    $region53: #{tpu_custom_call.1} parent=5 // pred_check
      _
    $region54: #{tpu_custom_call.1} parent=5 // pred_check_branch
      %294 = sbr.rel (%p291) target = $region56
    $region55: #{tpu_custom_call.1} parent=5 // pred_region
      %s295 = ssub.s32 %s17, 1
      %s296 = smul.u32 32, %s22
      %p297 = scmp.lt.s32.totalorder %s296, 95
      %s298 = scalar_select %p297, %s296, 95
      %s299 = smul.addr %s298, 8
      %s300 = scalar_lea.vmem %s0, %s299
      %p301 = pneg %p43
      %p302 = pneg %p40
      %p303 = pneg %p64
      %p304 = pneg %p61
      %p305 = pneg %p85
      %p306 = pneg %p82
      %p307 = pneg %p106
      %p308 = pneg %p103
      %p309 = pneg %p127
      %p310 = pneg %p124
      %p311 = pneg %p148
      %p312 = pneg %p145
      %p313 = pneg %p169
      %p314 = pneg %p166
      %p315 = pneg %p190
      %p316 = pneg %p187
      %p317 = pneg %p211
      %p318 = pneg %p208
      %p319 = pneg %p237
      %p320 = pneg %p234
      %s321 = smul.u32 32, %s22
      %p322 = scmp.lt.s32.totalorder %s321, 95
      %s323 = scalar_select %p322, %s321, 95
      %s324 = smul.addr %s323, 8
      %s325 = scalar_lea.vmem %s9, %s324
      %s326 = smul.u32 32, %s22
      %p327 = scmp.lt.s32.totalorder %s326, 95
      %s328 = scalar_select %p327, %s326, 95
      %s329 = smul.addr %s328, 8
      %s330 = scalar_lea.vmem %s0, %s329
      %s331 = smul.u32 32, %s22
      %s332 = smul.u32 32, %s22
      %p333 = scmp.lt.s32.totalorder %s332, 95
      %s334 = scalar_select %p333, %s332, 95
      %s335 = smul.addr %s334, 8
      %s336 = scalar_lea.vmem %s9, %s335
      %s337 = smul.u32 32, %s22
      %v338 = vld [vmem:[%s330] sm:$0xff]
      %v339 = vld [vmem:[%s330 + $0x8] sm:$0xff]
      %v340 = vld [vmem:[%s330 + $0x10] sm:$0xff]
      %v341 = vld [vmem:[%s330 + $0x18] sm:$0xff]
      %v342 = vld [vmem:[%s330 + $0x20] sm:$0xff]
      %v343 = vld [vmem:[%s330 + $0x28] sm:$0xff]
      %v344 = vld [vmem:[%s330 + $0x30] sm:$0xff]
      %v345 = vld [vmem:[%s330 + $0x38] sm:$0xff]
      %v346 = vld [vmem:[%s330 + $0x40] sm:$0xff]
      %v347 = vld [vmem:[%s330 + $0x48] sm:$0xff]
      %v348 = vld [vmem:[%s330 + $0x50] sm:$0xff]
      %v349 = vld [vmem:[%s330 + $0x58] sm:$0xff]
      %v350 = vld [vmem:[%s330 + $0x60] sm:$0xff]
      %v351 = vld [vmem:[%s330 + $0x68] sm:$0xff]
      %v352 = vld [vmem:[%s330 + $0x70] sm:$0xff]
      %v353 = vld [vmem:[%s330 + $0x78] sm:$0xff]
      %v354 = vld [vmem:[%s330 + $0x80] sm:$0xff]
      %v355 = vld [vmem:[%s330 + $0x88] sm:$0xff]
      %v356 = vld [vmem:[%s330 + $0x90] sm:$0xff]
      %v357 = vld [vmem:[%s330 + $0x98] sm:$0xff]
      %v358 = vld [vmem:[%s330 + $0xa0] sm:$0xff]
      %v359 = vld [vmem:[%s330 + $0xa8] sm:$0xff]
      %v360 = vld [vmem:[%s330 + $0xb0] sm:$0xff]
      %v361 = vld [vmem:[%s330 + $0xb8] sm:$0xff]
      %v362 = vld [vmem:[%s330 + $0xc0] sm:$0xff]
      %v363 = vld [vmem:[%s330 + $0xc8] sm:$0xff]
      %v364 = vld [vmem:[%s330 + $0xd0] sm:$0xff]
      %v365 = vld [vmem:[%s330 + $0xd8] sm:$0xff]
      %v366 = vld [vmem:[%s330 + $0xe0] sm:$0xff]
      %v367 = vld [vmem:[%s330 + $0xe8] sm:$0xff]
      %v368 = vld [vmem:[%s330 + $0xf0] sm:$0xff]
      %v369 = vld [vmem:[%s330 + $0xf8] sm:$0xff]
      %v370 = vld [vmem:[%s1] sm:$0xff]
      %v371 = vld [vmem:[%s1 + $0x8] sm:$0xff]
      %v372 = vld [vmem:[%s1 + $0x10] sm:$0xff]
      %v373 = vld [vmem:[%s1 + $0x18] sm:$0xff]
      %v374 = vld [vmem:[%s2] sm:$0x1]
      %v376 = vlaneseq
      %v377 = vshrl.u32 %v376, 7
      %v378 = vsub.s32 0, %v377
      %v379 = vrot.slane %v374, %v378
      %vm381 = vcmask 261120
      %v383 = vsel %vm381, %v338, 0
      %v386 = vsel %vm381, %v339, 0
      %v389 = vsel %vm381, %v340, 0
      %v392 = vsel %vm381, %v341, 0
      %v395 = vsel %vm381, %v342, 0
      %v398 = vsel %vm381, %v343, 0
      %v401 = vsel %vm381, %v344, 0
      %v404 = vsel %vm381, %v345, 0
      %v407 = vsel %vm381, %v346, 0
      %v410 = vsel %vm381, %v347, 0
      %v413 = vsel %vm381, %v348, 0
      %v416 = vsel %vm381, %v349, 0
      %v419 = vsel %vm381, %v350, 0
      %v422 = vsel %vm381, %v351, 0
      %v425 = vsel %vm381, %v352, 0
      %v428 = vsel %vm381, %v353, 0
      %v431 = vsel %vm381, %v354, 0
      %v434 = vsel %vm381, %v355, 0
      %v437 = vsel %vm381, %v356, 0
      %v440 = vsel %vm381, %v357, 0
      %v443 = vsel %vm381, %v358, 0
      %v446 = vsel %vm381, %v359, 0
      %v449 = vsel %vm381, %v360, 0
      %v452 = vsel %vm381, %v361, 0
      %v455 = vsel %vm381, %v362, 0
      %v458 = vsel %vm381, %v363, 0
      %v461 = vsel %vm381, %v364, 0
      %v464 = vsel %vm381, %v365, 0
      %v467 = vsel %vm381, %v366, 0
      %v470 = vsel %vm381, %v367, 0
      %v473 = vsel %vm381, %v368, 0
      %v476 = vsel %vm381, %v369, 0
      %478 = vmatprep.subr.mxu0 0.0
      %479 = vmatpush1.msra.mxu0 %v370
      %480 = vmatprep.subr.mxu0 0.0
      %481 = vmatpush1.msra.mxu0 %v371
      %482 = vmatprep.subr.mxu0 0.0
      %483 = vmatpush1.msra.mxu0 %v372
      %484 = vmatprep.subr.mxu0 0.0
      %485 = vmatpush1.msra.mxu0 %v373
      %486 = vmatprep.subr.mxu0 0.0
      %487 = vmatpush1.msra.mxu0 0.0
      %488 = vmatprep.subr.mxu0 0.0
      %489 = vmatpush1.msra.mxu0 0.0
      %490 = vmatprep.subr.mxu0 0.0
      %491 = vmatpush1.msra.mxu0 0.0
      %492 = vmatprep.subr.mxu0 0.0
      %493 = vmatpush1.msra.mxu0 0.0
      %494 = vmatprep.subr.mxu0 0.0
      %495 = vmatpush1.msra.mxu0 0.0
      %496 = vmatprep.subr.mxu0 0.0
      %497 = vmatpush1.msra.mxu0 0.0
      %498 = vmatprep.subr.mxu0 0.0
      %499 = vmatpush1.msra.mxu0 0.0
      %500 = vmatprep.subr.mxu0 0.0
      %501 = vmatpush1.msra.mxu0 0.0
      %502 = vmatprep.subr.mxu0 0.0
      %503 = vmatpush1.msra.mxu0 0.0
      %504 = vmatprep.subr.mxu0 0.0
      %505 = vmatpush1.msra.mxu0 0.0
      %506 = vmatprep.subr.mxu0 0.0
      %507 = vmatpush1.msra.mxu0 0.0
      %508 = vmatprep.subr.mxu0 0.0
      %509 = vmatpush1.msra.mxu0 0.0
      %510 = vmatprep.subr.mxu0 0.0
      %511 = vmatpush1.msra.mxu0 0.0
      %512 = vmatprep.subr.mxu0 0.0
      %513 = vmatpush1.msra.mxu0 0.0
      %514 = vmatprep.subr.mxu0 0.0
      %515 = vmatpush1.msra.mxu0 0.0
      %516 = vmatprep.subr.mxu0 0.0
      %517 = vmatpush1.msra.mxu0 0.0
      %518 = vmatprep.subr.mxu0 0.0
      %519 = vmatpush1.msra.mxu0 0.0
      %520 = vmatprep.subr.mxu0 0.0
      %521 = vmatpush1.msra.mxu0 0.0
      %522 = vmatprep.subr.mxu0 0.0
      %523 = vmatpush1.msra.mxu0 0.0
      %524 = vmatprep.subr.mxu0 0.0
      %525 = vmatpush1.msra.mxu0 0.0
      %526 = vmatprep.subr.mxu0 0.0
      %527 = vmatpush1.msra.mxu0 0.0
      %528 = vmatprep.subr.mxu0 0.0
      %529 = vmatpush1.msra.mxu0 0.0
      %530 = vmatprep.subr.mxu0 0.0
      %531 = vmatpush1.msra.mxu0 0.0
      %532 = vmatprep.subr.mxu0 0.0
      %533 = vmatpush1.msra.mxu0 0.0
      %534 = vmatprep.subr.mxu0 0.0
      %535 = vmatpush1.msra.mxu0 0.0
      %536 = vmatprep.subr.mxu0 0.0
      %537 = vmatpush1.msra.mxu0 0.0
      %538 = vmatprep.subr.mxu0 0.0
      %539 = vmatpush1.msra.mxu0 0.0
      %540 = vmatprep.subr.mxu0 0.0
      %541 = vmatpush1.msra.mxu0 0.0
      %542 = vmatprep.mubr.f32.mxu0 0.0
      %543 = vmatmul.mubr.f32.gmra.mrb[0].mxu0 %v383
      %v544 = vpop.f32.mrb[0].mxu0
      %v545 = vadd.f32 %v379, %v544
      %v546 = vpop.f32.mrb[0].mxu0
      %547 = vmatprep.mubr.f32.mxu0 0.0
      %548 = vmatmul.mubr.f32.gmra.mrb[0].mxu0 %v386
      %v549 = vpop.f32.mrb[0].mxu0
      %v550 = vadd.f32 %v379, %v549
      %v551 = vpop.f32.mrb[0].mxu0
      %552 = vmatprep.mubr.f32.mxu0 0.0
      %553 = vmatmul.mubr.f32.gmra.mrb[0].mxu0 %v389
      %v554 = vpop.f32.mrb[0].mxu0
      %v555 = vadd.f32 %v379, %v554
      %v556 = vpop.f32.mrb[0].mxu0
      %557 = vmatprep.mubr.f32.mxu0 0.0
      %558 = vmatmul.mubr.f32.gmra.mrb[0].mxu0 %v392
      %v559 = vpop.f32.mrb[0].mxu0
      %v560 = vadd.f32 %v379, %v559
      %v561 = vpop.f32.mrb[0].mxu0
      %562 = vmatprep.mubr.f32.mxu0 0.0
      %563 = vmatmul.mubr.f32.gmra.mrb[0].mxu0 %v395
      %v564 = vpop.f32.mrb[0].mxu0
      %v565 = vadd.f32 %v379, %v564
      %v566 = vpop.f32.mrb[0].mxu0
      %567 = vmatprep.mubr.f32.mxu0 0.0
      %568 = vmatmul.mubr.f32.gmra.mrb[0].mxu0 %v398
      %v569 = vpop.f32.mrb[0].mxu0
      %v570 = vadd.f32 %v379, %v569
      %v571 = vpop.f32.mrb[0].mxu0
      %572 = vmatprep.mubr.f32.mxu0 0.0
      %573 = vmatmul.mubr.f32.gmra.mrb[0].mxu0 %v401
      %v574 = vpop.f32.mrb[0].mxu0
      %v575 = vadd.f32 %v379, %v574
      %v576 = vpop.f32.mrb[0].mxu0
      %577 = vmatprep.mubr.f32.mxu0 0.0
      %578 = vmatmul.mubr.f32.gmra.mrb[0].mxu0 %v404
      %v579 = vpop.f32.mrb[0].mxu0
      %v580 = vadd.f32 %v379, %v579
      %v581 = vpop.f32.mrb[0].mxu0
      %582 = vmatprep.mubr.f32.mxu0 0.0
      %583 = vmatmul.mubr.f32.gmra.mrb[0].mxu0 %v407
      %v584 = vpop.f32.mrb[0].mxu0
      %v585 = vadd.f32 %v379, %v584
      %v586 = vpop.f32.mrb[0].mxu0
      %587 = vmatprep.mubr.f32.mxu0 0.0
      %588 = vmatmul.mubr.f32.gmra.mrb[0].mxu0 %v410
      %v589 = vpop.f32.mrb[0].mxu0
      %v590 = vadd.f32 %v379, %v589
      %v591 = vpop.f32.mrb[0].mxu0
      %592 = vmatprep.mubr.f32.mxu0 0.0
      %593 = vmatmul.mubr.f32.gmra.mrb[0].mxu0 %v413
      %v594 = vpop.f32.mrb[0].mxu0
      %v595 = vadd.f32 %v379, %v594
      %v596 = vpop.f32.mrb[0].mxu0
      %597 = vmatprep.mubr.f32.mxu0 0.0
      %598 = vmatmul.mubr.f32.gmra.mrb[0].mxu0 %v416
      %v599 = vpop.f32.mrb[0].mxu0
      %v600 = vadd.f32 %v379, %v599
      %v601 = vpop.f32.mrb[0].mxu0
      %602 = vmatprep.mubr.f32.mxu0 0.0
      %603 = vmatmul.mubr.f32.gmra.mrb[0].mxu0 %v419
      %v604 = vpop.f32.mrb[0].mxu0
      %v605 = vadd.f32 %v379, %v604
      %v606 = vpop.f32.mrb[0].mxu0
      %607 = vmatprep.mubr.f32.mxu0 0.0
      %608 = vmatmul.mubr.f32.gmra.mrb[0].mxu0 %v422
      %v609 = vpop.f32.mrb[0].mxu0
      %v610 = vadd.f32 %v379, %v609
      %v611 = vpop.f32.mrb[0].mxu0
      %612 = vmatprep.mubr.f32.mxu0 0.0
      %613 = vmatmul.mubr.f32.gmra.mrb[0].mxu0 %v425
      %v614 = vpop.f32.mrb[0].mxu0
      %v615 = vadd.f32 %v379, %v614
      %v616 = vpop.f32.mrb[0].mxu0
      %617 = vmatprep.mubr.f32.mxu0 0.0
      %618 = vmatmul.mubr.f32.gmra.mrb[0].mxu0 %v428
      %v619 = vpop.f32.mrb[0].mxu0
      %v620 = vadd.f32 %v379, %v619
      %v621 = vpop.f32.mrb[0].mxu0
      %622 = vmatprep.mubr.f32.mxu0 0.0
      %623 = vmatmul.mubr.f32.gmra.mrb[0].mxu0 %v431
      %v624 = vpop.f32.mrb[0].mxu0
      %v625 = vadd.f32 %v379, %v624
      %v626 = vpop.f32.mrb[0].mxu0
      %627 = vmatprep.mubr.f32.mxu0 0.0
      %628 = vmatmul.mubr.f32.gmra.mrb[0].mxu0 %v434
      %v629 = vpop.f32.mrb[0].mxu0
      %v630 = vadd.f32 %v379, %v629
      %v631 = vpop.f32.mrb[0].mxu0
      %632 = vmatprep.mubr.f32.mxu0 0.0
      %633 = vmatmul.mubr.f32.gmra.mrb[0].mxu0 %v437
      %v634 = vpop.f32.mrb[0].mxu0
      %v635 = vadd.f32 %v379, %v634
      %v636 = vpop.f32.mrb[0].mxu0
      %637 = vmatprep.mubr.f32.mxu0 0.0
      %638 = vmatmul.mubr.f32.gmra.mrb[0].mxu0 %v440
      %v639 = vpop.f32.mrb[0].mxu0
      %v640 = vadd.f32 %v379, %v639
      %v641 = vpop.f32.mrb[0].mxu0
      %642 = vmatprep.mubr.f32.mxu0 0.0
      %643 = vmatmul.mubr.f32.gmra.mrb[0].mxu0 %v443
      %v644 = vpop.f32.mrb[0].mxu0
      %v645 = vadd.f32 %v379, %v644
      %v646 = vpop.f32.mrb[0].mxu0
      %647 = vmatprep.mubr.f32.mxu0 0.0
      %648 = vmatmul.mubr.f32.gmra.mrb[0].mxu0 %v446
      %v649 = vpop.f32.mrb[0].mxu0
      %v650 = vadd.f32 %v379, %v649
      %v651 = vpop.f32.mrb[0].mxu0
      %652 = vmatprep.mubr.f32.mxu0 0.0
      %653 = vmatmul.mubr.f32.gmra.mrb[0].mxu0 %v449
      %v654 = vpop.f32.mrb[0].mxu0
      %v655 = vadd.f32 %v379, %v654
      %v656 = vpop.f32.mrb[0].mxu0
      %657 = vmatprep.mubr.f32.mxu0 0.0
      %658 = vmatmul.mubr.f32.gmra.mrb[0].mxu0 %v452
      %v659 = vpop.f32.mrb[0].mxu0
      %v660 = vadd.f32 %v379, %v659
      %v661 = vpop.f32.mrb[0].mxu0
      %662 = vmatprep.mubr.f32.mxu0 0.0
      %663 = vmatmul.mubr.f32.gmra.mrb[0].mxu0 %v455
      %v664 = vpop.f32.mrb[0].mxu0
      %v665 = vadd.f32 %v379, %v664
      %v666 = vpop.f32.mrb[0].mxu0
      %667 = vmatprep.mubr.f32.mxu0 0.0
      %668 = vmatmul.mubr.f32.gmra.mrb[0].mxu0 %v458
      %v669 = vpop.f32.mrb[0].mxu0
      %v670 = vadd.f32 %v379, %v669
      %v671 = vpop.f32.mrb[0].mxu0
      %672 = vmatprep.mubr.f32.mxu0 0.0
      %673 = vmatmul.mubr.f32.gmra.mrb[0].mxu0 %v461
      %v674 = vpop.f32.mrb[0].mxu0
      %v675 = vadd.f32 %v379, %v674
      %v676 = vpop.f32.mrb[0].mxu0
      %677 = vmatprep.mubr.f32.mxu0 0.0
      %678 = vmatmul.mubr.f32.gmra.mrb[0].mxu0 %v464
      %v679 = vpop.f32.mrb[0].mxu0
      %v680 = vadd.f32 %v379, %v679
      %v681 = vpop.f32.mrb[0].mxu0
      %682 = vmatprep.mubr.f32.mxu0 0.0
      %683 = vmatmul.mubr.f32.gmra.mrb[0].mxu0 %v467
      %v684 = vpop.f32.mrb[0].mxu0
      %v685 = vadd.f32 %v379, %v684
      %v686 = vpop.f32.mrb[0].mxu0
      %687 = vmatprep.mubr.f32.mxu0 0.0
      %688 = vmatmul.mubr.f32.gmra.mrb[0].mxu0 %v470
      %v689 = vpop.f32.mrb[0].mxu0
      %v690 = vadd.f32 %v379, %v689
      %v691 = vpop.f32.mrb[0].mxu0
      %692 = vmatprep.mubr.f32.mxu0 0.0
      %693 = vmatmul.mubr.f32.gmra.mrb[0].mxu0 %v473
      %v694 = vpop.f32.mrb[0].mxu0
      %v695 = vadd.f32 %v379, %v694
      %v696 = vpop.f32.mrb[0].mxu0
      %697 = vmatprep.mubr.f32.mxu0 0.0
      %698 = vmatmul.mubr.f32.gmra.mrb[0].mxu0 %v476
      %v699 = vpop.f32.mrb[0].mxu0
      %v700 = vadd.f32 %v379, %v699
      %v701 = vpop.f32.mrb[0].mxu0
      %702 = vdwg.mxu0
      %v703 = vxor.u32 %v545, 2147483648
      %v704 = vxor.u32 %v550, 2147483648
      %v705 = vxor.u32 %v555, 2147483648
      %v706 = vxor.u32 %v560, 2147483648
      %v707 = vxor.u32 %v565, 2147483648
      %v708 = vxor.u32 %v570, 2147483648
      %v709 = vxor.u32 %v575, 2147483648
      %v710 = vxor.u32 %v580, 2147483648
      %v711 = vxor.u32 %v585, 2147483648
      %v712 = vxor.u32 %v590, 2147483648
      %v713 = vxor.u32 %v595, 2147483648
      %v714 = vxor.u32 %v600, 2147483648
      %v715 = vxor.u32 %v605, 2147483648
      %v716 = vxor.u32 %v610, 2147483648
      %v717 = vxor.u32 %v615, 2147483648
      %v718 = vxor.u32 %v620, 2147483648
      %v719 = vxor.u32 %v625, 2147483648
      %v720 = vxor.u32 %v630, 2147483648
      %v721 = vxor.u32 %v635, 2147483648
      %v722 = vxor.u32 %v640, 2147483648
      %v723 = vxor.u32 %v645, 2147483648
      %v724 = vxor.u32 %v650, 2147483648
      %v725 = vxor.u32 %v655, 2147483648
      %v726 = vxor.u32 %v660, 2147483648
      %v727 = vxor.u32 %v665, 2147483648
      %v728 = vxor.u32 %v670, 2147483648
      %v729 = vxor.u32 %v675, 2147483648
      %v730 = vxor.u32 %v680, 2147483648
      %v731 = vxor.u32 %v685, 2147483648
      %v732 = vxor.u32 %v690, 2147483648
      %v733 = vxor.u32 %v695, 2147483648
      %v734 = vxor.u32 %v700, 2147483648
      %v735 = vmul.f32 %v703, 1.442695
      %v736 = vpow.pop %v735
      %v737 = vmul.f32 %v704, 1.442695
      %v738 = vpow.pop %v737
      %v739 = vmul.f32 %v705, 1.442695
      %v740 = vpow.pop %v739
      %v741 = vmul.f32 %v706, 1.442695
      %v742 = vpow.pop %v741
      %v743 = vmul.f32 %v707, 1.442695
      %v744 = vpow.pop %v743
      %v745 = vmul.f32 %v708, 1.442695
      %v746 = vpow.pop %v745
      %v747 = vmul.f32 %v709, 1.442695
      %v748 = vpow.pop %v747
      %v749 = vmul.f32 %v710, 1.442695
      %v750 = vpow.pop %v749
      %v751 = vmul.f32 %v711, 1.442695
      %v752 = vpow.pop %v751
      %v753 = vmul.f32 %v712, 1.442695
      %v754 = vpow.pop %v753
      %v755 = vmul.f32 %v713, 1.442695
      %v756 = vpow.pop %v755
      %v757 = vmul.f32 %v714, 1.442695
      %v758 = vpow.pop %v757
      %v759 = vmul.f32 %v715, 1.442695
      %v760 = vpow.pop %v759
      %v761 = vmul.f32 %v716, 1.442695
      %v762 = vpow.pop %v761
      %v763 = vmul.f32 %v717, 1.442695
      %v764 = vpow.pop %v763
      %v765 = vmul.f32 %v718, 1.442695
      %v766 = vpow.pop %v765
      %v767 = vmul.f32 %v719, 1.442695
      %v768 = vpow.pop %v767
      %v769 = vmul.f32 %v720, 1.442695
      %v770 = vpow.pop %v769
      %v771 = vmul.f32 %v721, 1.442695
      %v772 = vpow.pop %v771
      %v773 = vmul.f32 %v722, 1.442695
      %v774 = vpow.pop %v773
      %v775 = vmul.f32 %v723, 1.442695
      %v776 = vpow.pop %v775
      %v777 = vmul.f32 %v724, 1.442695
      %v778 = vpow.pop %v777
      %v779 = vmul.f32 %v725, 1.442695
      %v780 = vpow.pop %v779
      %v781 = vmul.f32 %v726, 1.442695
      %v782 = vpow.pop %v781
      %v783 = vmul.f32 %v727, 1.442695
      %v784 = vpow.pop %v783
      %v785 = vmul.f32 %v728, 1.442695
      %v786 = vpow.pop %v785
      %v787 = vmul.f32 %v729, 1.442695
      %v788 = vpow.pop %v787
      %v789 = vmul.f32 %v730, 1.442695
      %v790 = vpow.pop %v789
      %v791 = vmul.f32 %v731, 1.442695
      %v792 = vpow.pop %v791
      %v793 = vmul.f32 %v732, 1.442695
      %v794 = vpow.pop %v793
      %v795 = vmul.f32 %v733, 1.442695
      %v796 = vpow.pop %v795
      %v797 = vmul.f32 %v734, 1.442695
      %v798 = vpow.pop %v797
      %v799 = vadd.f32 %v736, 1.0
      %v800 = vadd.f32 %v738, 1.0
      %v801 = vadd.f32 %v740, 1.0
      %v802 = vadd.f32 %v742, 1.0
      %v803 = vadd.f32 %v744, 1.0
      %v804 = vadd.f32 %v746, 1.0
      %v805 = vadd.f32 %v748, 1.0
      %v806 = vadd.f32 %v750, 1.0
      %v807 = vadd.f32 %v752, 1.0
      %v808 = vadd.f32 %v754, 1.0
      %v809 = vadd.f32 %v756, 1.0
      %v810 = vadd.f32 %v758, 1.0
      %v811 = vadd.f32 %v760, 1.0
      %v812 = vadd.f32 %v762, 1.0
      %v813 = vadd.f32 %v764, 1.0
      %v814 = vadd.f32 %v766, 1.0
      %v815 = vadd.f32 %v768, 1.0
      %v816 = vadd.f32 %v770, 1.0
      %v817 = vadd.f32 %v772, 1.0
      %v818 = vadd.f32 %v774, 1.0
      %v819 = vadd.f32 %v776, 1.0
      %v820 = vadd.f32 %v778, 1.0
      %v821 = vadd.f32 %v780, 1.0
      %v822 = vadd.f32 %v782, 1.0
      %v823 = vadd.f32 %v784, 1.0
      %v824 = vadd.f32 %v786, 1.0
      %v825 = vadd.f32 %v788, 1.0
      %v826 = vadd.f32 %v790, 1.0
      %v827 = vadd.f32 %v792, 1.0
      %v828 = vadd.f32 %v794, 1.0
      %v829 = vadd.f32 %v796, 1.0
      %v830 = vadd.f32 %v798, 1.0
      %v831 = vrcp.pop %v799
      %v832 = vmul.f32 1.0, %v831
      %v833 = vrcp.pop %v800
      %v834 = vmul.f32 1.0, %v833
      %v835 = vrcp.pop %v801
      %v836 = vmul.f32 1.0, %v835
      %v837 = vrcp.pop %v802
      %v838 = vmul.f32 1.0, %v837
      %v839 = vrcp.pop %v803
      %v840 = vmul.f32 1.0, %v839
      %v841 = vrcp.pop %v804
      %v842 = vmul.f32 1.0, %v841
      %v843 = vrcp.pop %v805
      %v844 = vmul.f32 1.0, %v843
      %v845 = vrcp.pop %v806
      %v846 = vmul.f32 1.0, %v845
      %v847 = vrcp.pop %v807
      %v848 = vmul.f32 1.0, %v847
      %v849 = vrcp.pop %v808
      %v850 = vmul.f32 1.0, %v849
      %v851 = vrcp.pop %v809
      %v852 = vmul.f32 1.0, %v851
      %v853 = vrcp.pop %v810
      %v854 = vmul.f32 1.0, %v853
      %v855 = vrcp.pop %v811
      %v856 = vmul.f32 1.0, %v855
      %v857 = vrcp.pop %v812
      %v858 = vmul.f32 1.0, %v857
      %v859 = vrcp.pop %v813
      %v860 = vmul.f32 1.0, %v859
      %v861 = vrcp.pop %v814
      %v862 = vmul.f32 1.0, %v861
      %v863 = vrcp.pop %v815
      %v864 = vmul.f32 1.0, %v863
      %v865 = vrcp.pop %v816
      %v866 = vmul.f32 1.0, %v865
      %v867 = vrcp.pop %v817
      %v868 = vmul.f32 1.0, %v867
      %v869 = vrcp.pop %v818
      %v870 = vmul.f32 1.0, %v869
      %v871 = vrcp.pop %v819
      %v872 = vmul.f32 1.0, %v871
      %v873 = vrcp.pop %v820
      %v874 = vmul.f32 1.0, %v873
      %v875 = vrcp.pop %v821
      %v876 = vmul.f32 1.0, %v875
      %v877 = vrcp.pop %v822
      %v878 = vmul.f32 1.0, %v877
      %v879 = vrcp.pop %v823
      %v880 = vmul.f32 1.0, %v879
      %v881 = vrcp.pop %v824
      %v882 = vmul.f32 1.0, %v881
      %v883 = vrcp.pop %v825
      %v884 = vmul.f32 1.0, %v883
      %v885 = vrcp.pop %v826
      %v886 = vmul.f32 1.0, %v885
      %v887 = vrcp.pop %v827
      %v888 = vmul.f32 1.0, %v887
      %v889 = vrcp.pop %v828
      %v890 = vmul.f32 1.0, %v889
      %v891 = vrcp.pop %v829
      %v892 = vmul.f32 1.0, %v891
      %v893 = vrcp.pop %v830
      %v894 = vmul.f32 1.0, %v893
      %v895 = vmul.f32 %v545, %v832
      %v896 = vmul.f32 %v550, %v834
      %v897 = vmul.f32 %v555, %v836
      %v898 = vmul.f32 %v560, %v838
      %v899 = vmul.f32 %v565, %v840
      %v900 = vmul.f32 %v570, %v842
      %v901 = vmul.f32 %v575, %v844
      %v902 = vmul.f32 %v580, %v846
      %v903 = vmul.f32 %v585, %v848
      %v904 = vmul.f32 %v590, %v850
      %v905 = vmul.f32 %v595, %v852
      %v906 = vmul.f32 %v600, %v854
      %v907 = vmul.f32 %v605, %v856
      %v908 = vmul.f32 %v610, %v858
      %v909 = vmul.f32 %v615, %v860
      %v910 = vmul.f32 %v620, %v862
      %v911 = vmul.f32 %v625, %v864
      %v912 = vmul.f32 %v630, %v866
      %v913 = vmul.f32 %v635, %v868
      %v914 = vmul.f32 %v640, %v870
      %v915 = vmul.f32 %v645, %v872
      %v916 = vmul.f32 %v650, %v874
      %v917 = vmul.f32 %v655, %v876
      %v918 = vmul.f32 %v660, %v878
      %v919 = vmul.f32 %v665, %v880
      %v920 = vmul.f32 %v670, %v882
      %v921 = vmul.f32 %v675, %v884
      %v922 = vmul.f32 %v680, %v886
      %v923 = vmul.f32 %v685, %v888
      %v924 = vmul.f32 %v690, %v890
      %v925 = vmul.f32 %v695, %v892
      %v926 = vmul.f32 %v700, %v894
      %v927 = vld [vmem:[%s3] sm:$0xff]
      %v928 = vld [vmem:[%s3 + $0x8] sm:$0xff]
      %v929 = vld [vmem:[%s4] sm:$0x1]
      %v931 = vlaneseq
      %v932 = vshrl.u32 %v931, 7
      %v933 = vsub.s32 0, %v932
      %v934 = vrot.slane %v929, %v933
      %vm936 = vcmask 130048
      %v938 = vsel %vm936, %v895, 0
      %v941 = vsel %vm936, %v896, 0
      %v944 = vsel %vm936, %v897, 0
      %v947 = vsel %vm936, %v898, 0
      %v950 = vsel %vm936, %v899, 0
      %v953 = vsel %vm936, %v900, 0
      %v956 = vsel %vm936, %v901, 0
      %v959 = vsel %vm936, %v902, 0
      %v962 = vsel %vm936, %v903, 0
      %v965 = vsel %vm936, %v904, 0
      %v968 = vsel %vm936, %v905, 0
      %v971 = vsel %vm936, %v906, 0
      %v974 = vsel %vm936, %v907, 0
      %v977 = vsel %vm936, %v908, 0
      %v980 = vsel %vm936, %v909, 0
      %v983 = vsel %vm936, %v910, 0
      %v986 = vsel %vm936, %v911, 0
      %v989 = vsel %vm936, %v912, 0
      %v992 = vsel %vm936, %v913, 0
      %v995 = vsel %vm936, %v914, 0
      %v998 = vsel %vm936, %v915, 0
      %v1001 = vsel %vm936, %v916, 0
      %v1004 = vsel %vm936, %v917, 0
      %v1007 = vsel %vm936, %v918, 0
      %v1010 = vsel %vm936, %v919, 0
      %v1013 = vsel %vm936, %v920, 0
      %v1016 = vsel %vm936, %v921, 0
      %v1019 = vsel %vm936, %v922, 0
      %v1022 = vsel %vm936, %v923, 0
      %v1025 = vsel %vm936, %v924, 0
      %v1028 = vsel %vm936, %v925, 0
      %v1031 = vsel %vm936, %v926, 0
      %1033 = vmatprep.subr.mxu0 0.0
      %1034 = vmatpush1.msra.mxu0 %v927
      %1035 = vmatprep.subr.mxu0 0.0
      %1036 = vmatpush1.msra.mxu0 %v928
      %1037 = vmatprep.subr.mxu0 0.0
      %1038 = vmatpush1.msra.mxu0 0.0
      %1039 = vmatprep.subr.mxu0 0.0
      %1040 = vmatpush1.msra.mxu0 0.0
      %1041 = vmatprep.subr.mxu0 0.0
      %1042 = vmatpush1.msra.mxu0 0.0
      %1043 = vmatprep.subr.mxu0 0.0
      %1044 = vmatpush1.msra.mxu0 0.0
      %1045 = vmatprep.subr.mxu0 0.0
      %1046 = vmatpush1.msra.mxu0 0.0
      %1047 = vmatprep.subr.mxu0 0.0
      %1048 = vmatpush1.msra.mxu0 0.0
      %1049 = vmatprep.subr.mxu0 0.0
      %1050 = vmatpush1.msra.mxu0 0.0
      %1051 = vmatprep.subr.mxu0 0.0
      %1052 = vmatpush1.msra.mxu0 0.0
      %1053 = vmatprep.subr.mxu0 0.0
      %1054 = vmatpush1.msra.mxu0 0.0
      %1055 = vmatprep.subr.mxu0 0.0
      %1056 = vmatpush1.msra.mxu0 0.0
      %1057 = vmatprep.subr.mxu0 0.0
      %1058 = vmatpush1.msra.mxu0 0.0
      %1059 = vmatprep.subr.mxu0 0.0
      %1060 = vmatpush1.msra.mxu0 0.0
      %1061 = vmatprep.subr.mxu0 0.0
      %1062 = vmatpush1.msra.mxu0 0.0
      %1063 = vmatprep.subr.mxu0 0.0
      %1064 = vmatpush1.msra.mxu0 0.0
      %1065 = vmatprep.subr.mxu0 0.0
      %1066 = vmatpush1.msra.mxu0 0.0
      %1067 = vmatprep.subr.mxu0 0.0
      %1068 = vmatpush1.msra.mxu0 0.0
      %1069 = vmatprep.subr.mxu0 0.0
      %1070 = vmatpush1.msra.mxu0 0.0
      %1071 = vmatprep.subr.mxu0 0.0
      %1072 = vmatpush1.msra.mxu0 0.0
      %1073 = vmatprep.subr.mxu0 0.0
      %1074 = vmatpush1.msra.mxu0 0.0
      %1075 = vmatprep.subr.mxu0 0.0
      %1076 = vmatpush1.msra.mxu0 0.0
      %1077 = vmatprep.subr.mxu0 0.0
      %1078 = vmatpush1.msra.mxu0 0.0
      %1079 = vmatprep.subr.mxu0 0.0
      %1080 = vmatpush1.msra.mxu0 0.0
      %1081 = vmatprep.subr.mxu0 0.0
      %1082 = vmatpush1.msra.mxu0 0.0
      %1083 = vmatprep.subr.mxu0 0.0
      %1084 = vmatpush1.msra.mxu0 0.0
      %1085 = vmatprep.subr.mxu0 0.0
      %1086 = vmatpush1.msra.mxu0 0.0
      %1087 = vmatprep.subr.mxu0 0.0
      %1088 = vmatpush1.msra.mxu0 0.0
      %1089 = vmatprep.subr.mxu0 0.0
      %1090 = vmatpush1.msra.mxu0 0.0
      %1091 = vmatprep.subr.mxu0 0.0
      %1092 = vmatpush1.msra.mxu0 0.0
      %1093 = vmatprep.subr.mxu0 0.0
      %1094 = vmatpush1.msra.mxu0 0.0
      %1095 = vmatprep.subr.mxu0 0.0
      %1096 = vmatpush1.msra.mxu0 0.0
      %1097 = vmatprep.mubr.f32.mxu0 0.0
      %1098 = vmatmul.mubr.f32.gmra.mrb[0].mxu0 %v938
      %v1099 = vpop.f32.mrb[0].mxu0
      %v1100 = vadd.f32 %v934, %v1099
      %v1101 = vpop.f32.mrb[0].mxu0
      %1102 = vmatprep.mubr.f32.mxu0 0.0
      %1103 = vmatmul.mubr.f32.gmra.mrb[0].mxu0 %v941
      %v1104 = vpop.f32.mrb[0].mxu0
      %v1105 = vadd.f32 %v934, %v1104
      %v1106 = vpop.f32.mrb[0].mxu0
      %1107 = vmatprep.mubr.f32.mxu0 0.0
      %1108 = vmatmul.mubr.f32.gmra.mrb[0].mxu0 %v944
      %v1109 = vpop.f32.mrb[0].mxu0
      %v1110 = vadd.f32 %v934, %v1109
      %v1111 = vpop.f32.mrb[0].mxu0
      %1112 = vmatprep.mubr.f32.mxu0 0.0
      %1113 = vmatmul.mubr.f32.gmra.mrb[0].mxu0 %v947
      %v1114 = vpop.f32.mrb[0].mxu0
      %v1115 = vadd.f32 %v934, %v1114
      %v1116 = vpop.f32.mrb[0].mxu0
      %1117 = vmatprep.mubr.f32.mxu0 0.0
      %1118 = vmatmul.mubr.f32.gmra.mrb[0].mxu0 %v950
      %v1119 = vpop.f32.mrb[0].mxu0
      %v1120 = vadd.f32 %v934, %v1119
      %v1121 = vpop.f32.mrb[0].mxu0
      %1122 = vmatprep.mubr.f32.mxu0 0.0
      %1123 = vmatmul.mubr.f32.gmra.mrb[0].mxu0 %v953
      %v1124 = vpop.f32.mrb[0].mxu0
      %v1125 = vadd.f32 %v934, %v1124
      %v1126 = vpop.f32.mrb[0].mxu0
      %1127 = vmatprep.mubr.f32.mxu0 0.0
      %1128 = vmatmul.mubr.f32.gmra.mrb[0].mxu0 %v956
      %v1129 = vpop.f32.mrb[0].mxu0
      %v1130 = vadd.f32 %v934, %v1129
      %v1131 = vpop.f32.mrb[0].mxu0
      %1132 = vmatprep.mubr.f32.mxu0 0.0
      %1133 = vmatmul.mubr.f32.gmra.mrb[0].mxu0 %v959
      %v1134 = vpop.f32.mrb[0].mxu0
      %v1135 = vadd.f32 %v934, %v1134
      %v1136 = vpop.f32.mrb[0].mxu0
      %1137 = vmatprep.mubr.f32.mxu0 0.0
      %1138 = vmatmul.mubr.f32.gmra.mrb[0].mxu0 %v962
      %v1139 = vpop.f32.mrb[0].mxu0
      %v1140 = vadd.f32 %v934, %v1139
      %v1141 = vpop.f32.mrb[0].mxu0
      %1142 = vmatprep.mubr.f32.mxu0 0.0
      %1143 = vmatmul.mubr.f32.gmra.mrb[0].mxu0 %v965
      %v1144 = vpop.f32.mrb[0].mxu0
      %v1145 = vadd.f32 %v934, %v1144
      %v1146 = vpop.f32.mrb[0].mxu0
      %1147 = vmatprep.mubr.f32.mxu0 0.0
      %1148 = vmatmul.mubr.f32.gmra.mrb[0].mxu0 %v968
      %v1149 = vpop.f32.mrb[0].mxu0
      %v1150 = vadd.f32 %v934, %v1149
      %v1151 = vpop.f32.mrb[0].mxu0
      %1152 = vmatprep.mubr.f32.mxu0 0.0
      %1153 = vmatmul.mubr.f32.gmra.mrb[0].mxu0 %v971
      %v1154 = vpop.f32.mrb[0].mxu0
      %v1155 = vadd.f32 %v934, %v1154
      %v1156 = vpop.f32.mrb[0].mxu0
      %1157 = vmatprep.mubr.f32.mxu0 0.0
      %1158 = vmatmul.mubr.f32.gmra.mrb[0].mxu0 %v974
      %v1159 = vpop.f32.mrb[0].mxu0
      %v1160 = vadd.f32 %v934, %v1159
      %v1161 = vpop.f32.mrb[0].mxu0
      %1162 = vmatprep.mubr.f32.mxu0 0.0
      %1163 = vmatmul.mubr.f32.gmra.mrb[0].mxu0 %v977
      %v1164 = vpop.f32.mrb[0].mxu0
      %v1165 = vadd.f32 %v934, %v1164
      %v1166 = vpop.f32.mrb[0].mxu0
      %1167 = vmatprep.mubr.f32.mxu0 0.0
      %1168 = vmatmul.mubr.f32.gmra.mrb[0].mxu0 %v980
      %v1169 = vpop.f32.mrb[0].mxu0
      %v1170 = vadd.f32 %v934, %v1169
      %v1171 = vpop.f32.mrb[0].mxu0
      %1172 = vmatprep.mubr.f32.mxu0 0.0
      %1173 = vmatmul.mubr.f32.gmra.mrb[0].mxu0 %v983
      %v1174 = vpop.f32.mrb[0].mxu0
      %v1175 = vadd.f32 %v934, %v1174
      %v1176 = vpop.f32.mrb[0].mxu0
      %1177 = vmatprep.mubr.f32.mxu0 0.0
      %1178 = vmatmul.mubr.f32.gmra.mrb[0].mxu0 %v986
      %v1179 = vpop.f32.mrb[0].mxu0
      %v1180 = vadd.f32 %v934, %v1179
      %v1181 = vpop.f32.mrb[0].mxu0
      %1182 = vmatprep.mubr.f32.mxu0 0.0
      %1183 = vmatmul.mubr.f32.gmra.mrb[0].mxu0 %v989
      %v1184 = vpop.f32.mrb[0].mxu0
      %v1185 = vadd.f32 %v934, %v1184
      %v1186 = vpop.f32.mrb[0].mxu0
      %1187 = vmatprep.mubr.f32.mxu0 0.0
      %1188 = vmatmul.mubr.f32.gmra.mrb[0].mxu0 %v992
      %v1189 = vpop.f32.mrb[0].mxu0
      %v1190 = vadd.f32 %v934, %v1189
      %v1191 = vpop.f32.mrb[0].mxu0
      %1192 = vmatprep.mubr.f32.mxu0 0.0
      %1193 = vmatmul.mubr.f32.gmra.mrb[0].mxu0 %v995
      %v1194 = vpop.f32.mrb[0].mxu0
      %v1195 = vadd.f32 %v934, %v1194
      %v1196 = vpop.f32.mrb[0].mxu0
      %1197 = vmatprep.mubr.f32.mxu0 0.0
      %1198 = vmatmul.mubr.f32.gmra.mrb[0].mxu0 %v998
      %v1199 = vpop.f32.mrb[0].mxu0
      %v1200 = vadd.f32 %v934, %v1199
      %v1201 = vpop.f32.mrb[0].mxu0
      %1202 = vmatprep.mubr.f32.mxu0 0.0
      %1203 = vmatmul.mubr.f32.gmra.mrb[0].mxu0 %v1001
      %v1204 = vpop.f32.mrb[0].mxu0
      %v1205 = vadd.f32 %v934, %v1204
      %v1206 = vpop.f32.mrb[0].mxu0
      %1207 = vmatprep.mubr.f32.mxu0 0.0
      %1208 = vmatmul.mubr.f32.gmra.mrb[0].mxu0 %v1004
      %v1209 = vpop.f32.mrb[0].mxu0
      %v1210 = vadd.f32 %v934, %v1209
      %v1211 = vpop.f32.mrb[0].mxu0
      %1212 = vmatprep.mubr.f32.mxu0 0.0
      %1213 = vmatmul.mubr.f32.gmra.mrb[0].mxu0 %v1007
      %v1214 = vpop.f32.mrb[0].mxu0
      %v1215 = vadd.f32 %v934, %v1214
      %v1216 = vpop.f32.mrb[0].mxu0
      %1217 = vmatprep.mubr.f32.mxu0 0.0
      %1218 = vmatmul.mubr.f32.gmra.mrb[0].mxu0 %v1010
      %v1219 = vpop.f32.mrb[0].mxu0
      %v1220 = vadd.f32 %v934, %v1219
      %v1221 = vpop.f32.mrb[0].mxu0
      %1222 = vmatprep.mubr.f32.mxu0 0.0
      %1223 = vmatmul.mubr.f32.gmra.mrb[0].mxu0 %v1013
      %v1224 = vpop.f32.mrb[0].mxu0
      %v1225 = vadd.f32 %v934, %v1224
      %v1226 = vpop.f32.mrb[0].mxu0
      %1227 = vmatprep.mubr.f32.mxu0 0.0
      %1228 = vmatmul.mubr.f32.gmra.mrb[0].mxu0 %v1016
      %v1229 = vpop.f32.mrb[0].mxu0
      %v1230 = vadd.f32 %v934, %v1229
      %v1231 = vpop.f32.mrb[0].mxu0
      %1232 = vmatprep.mubr.f32.mxu0 0.0
      %1233 = vmatmul.mubr.f32.gmra.mrb[0].mxu0 %v1019
      %v1234 = vpop.f32.mrb[0].mxu0
      %v1235 = vadd.f32 %v934, %v1234
      %v1236 = vpop.f32.mrb[0].mxu0
      %1237 = vmatprep.mubr.f32.mxu0 0.0
      %1238 = vmatmul.mubr.f32.gmra.mrb[0].mxu0 %v1022
      %v1239 = vpop.f32.mrb[0].mxu0
      %v1240 = vadd.f32 %v934, %v1239
      %v1241 = vpop.f32.mrb[0].mxu0
      %1242 = vmatprep.mubr.f32.mxu0 0.0
      %1243 = vmatmul.mubr.f32.gmra.mrb[0].mxu0 %v1025
      %v1244 = vpop.f32.mrb[0].mxu0
      %v1245 = vadd.f32 %v934, %v1244
      %v1246 = vpop.f32.mrb[0].mxu0
      %1247 = vmatprep.mubr.f32.mxu0 0.0
      %1248 = vmatmul.mubr.f32.gmra.mrb[0].mxu0 %v1028
      %v1249 = vpop.f32.mrb[0].mxu0
      %v1250 = vadd.f32 %v934, %v1249
      %v1251 = vpop.f32.mrb[0].mxu0
      %1252 = vmatprep.mubr.f32.mxu0 0.0
      %1253 = vmatmul.mubr.f32.gmra.mrb[0].mxu0 %v1031
      %v1254 = vpop.f32.mrb[0].mxu0
      %v1255 = vadd.f32 %v934, %v1254
      %v1256 = vpop.f32.mrb[0].mxu0
      %1257 = vdwg.mxu0
      %vm1258 = vcmp.ge.f32.partialorder %v1100, 0.0
      %vm1259 = vcmp.ge.f32.partialorder %v1105, 0.0
      %vm1260 = vcmp.ge.f32.partialorder %v1110, 0.0
      %vm1261 = vcmp.ge.f32.partialorder %v1115, 0.0
      %vm1262 = vcmp.ge.f32.partialorder %v1120, 0.0
      %vm1263 = vcmp.ge.f32.partialorder %v1125, 0.0
      %vm1264 = vcmp.ge.f32.partialorder %v1130, 0.0
      %vm1265 = vcmp.ge.f32.partialorder %v1135, 0.0
      %vm1266 = vcmp.ge.f32.partialorder %v1140, 0.0
      %vm1267 = vcmp.ge.f32.partialorder %v1145, 0.0
      %vm1268 = vcmp.ge.f32.partialorder %v1150, 0.0
      %vm1269 = vcmp.ge.f32.partialorder %v1155, 0.0
      %vm1270 = vcmp.ge.f32.partialorder %v1160, 0.0
      %vm1271 = vcmp.ge.f32.partialorder %v1165, 0.0
      %vm1272 = vcmp.ge.f32.partialorder %v1170, 0.0
      %vm1273 = vcmp.ge.f32.partialorder %v1175, 0.0
      %vm1274 = vcmp.ge.f32.partialorder %v1180, 0.0
      %vm1275 = vcmp.ge.f32.partialorder %v1185, 0.0
      %vm1276 = vcmp.ge.f32.partialorder %v1190, 0.0
      %vm1277 = vcmp.ge.f32.partialorder %v1195, 0.0
      %vm1278 = vcmp.ge.f32.partialorder %v1200, 0.0
      %vm1279 = vcmp.ge.f32.partialorder %v1205, 0.0
      %vm1280 = vcmp.ge.f32.partialorder %v1210, 0.0
      %vm1281 = vcmp.ge.f32.partialorder %v1215, 0.0
      %vm1282 = vcmp.ge.f32.partialorder %v1220, 0.0
      %vm1283 = vcmp.ge.f32.partialorder %v1225, 0.0
      %vm1284 = vcmp.ge.f32.partialorder %v1230, 0.0
      %vm1285 = vcmp.ge.f32.partialorder %v1235, 0.0
      %vm1286 = vcmp.ge.f32.partialorder %v1240, 0.0
      %vm1287 = vcmp.ge.f32.partialorder %v1245, 0.0
      %vm1288 = vcmp.ge.f32.partialorder %v1250, 0.0
      %vm1289 = vcmp.ge.f32.partialorder %v1255, 0.0
      %v1290 = vmul.f32 %v1100, 0.01
      %v1291 = vmul.f32 %v1105, 0.01
      %v1292 = vmul.f32 %v1110, 0.01
      %v1293 = vmul.f32 %v1115, 0.01
      %v1294 = vmul.f32 %v1120, 0.01
      %v1295 = vmul.f32 %v1125, 0.01
      %v1296 = vmul.f32 %v1130, 0.01
      %v1297 = vmul.f32 %v1135, 0.01
      %v1298 = vmul.f32 %v1140, 0.01
      %v1299 = vmul.f32 %v1145, 0.01
      %v1300 = vmul.f32 %v1150, 0.01
      %v1301 = vmul.f32 %v1155, 0.01
      %v1302 = vmul.f32 %v1160, 0.01
      %v1303 = vmul.f32 %v1165, 0.01
      %v1304 = vmul.f32 %v1170, 0.01
      %v1305 = vmul.f32 %v1175, 0.01
      %v1306 = vmul.f32 %v1180, 0.01
      %v1307 = vmul.f32 %v1185, 0.01
      %v1308 = vmul.f32 %v1190, 0.01
      %v1309 = vmul.f32 %v1195, 0.01
      %v1310 = vmul.f32 %v1200, 0.01
      %v1311 = vmul.f32 %v1205, 0.01
      %v1312 = vmul.f32 %v1210, 0.01
      %v1313 = vmul.f32 %v1215, 0.01
      %v1314 = vmul.f32 %v1220, 0.01
      %v1315 = vmul.f32 %v1225, 0.01
      %v1316 = vmul.f32 %v1230, 0.01
      %v1317 = vmul.f32 %v1235, 0.01
      %v1318 = vmul.f32 %v1240, 0.01
      %v1319 = vmul.f32 %v1245, 0.01
      %v1320 = vmul.f32 %v1250, 0.01
      %v1321 = vmul.f32 %v1255, 0.01
      %v1322 = vsel %vm1258, %v1100, %v1290
      %v1323 = vsel %vm1259, %v1105, %v1291
      %v1324 = vsel %vm1260, %v1110, %v1292
      %v1325 = vsel %vm1261, %v1115, %v1293
      %v1326 = vsel %vm1262, %v1120, %v1294
      %v1327 = vsel %vm1263, %v1125, %v1295
      %v1328 = vsel %vm1264, %v1130, %v1296
      %v1329 = vsel %vm1265, %v1135, %v1297
      %v1330 = vsel %vm1266, %v1140, %v1298
      %v1331 = vsel %vm1267, %v1145, %v1299
      %v1332 = vsel %vm1268, %v1150, %v1300
      %v1333 = vsel %vm1269, %v1155, %v1301
      %v1334 = vsel %vm1270, %v1160, %v1302
      %v1335 = vsel %vm1271, %v1165, %v1303
      %v1336 = vsel %vm1272, %v1170, %v1304
      %v1337 = vsel %vm1273, %v1175, %v1305
      %v1338 = vsel %vm1274, %v1180, %v1306
      %v1339 = vsel %vm1275, %v1185, %v1307
      %v1340 = vsel %vm1276, %v1190, %v1308
      %v1341 = vsel %vm1277, %v1195, %v1309
      %v1342 = vsel %vm1278, %v1200, %v1310
      %v1343 = vsel %vm1279, %v1205, %v1311
      %v1344 = vsel %vm1280, %v1210, %v1312
      %v1345 = vsel %vm1281, %v1215, %v1313
      %v1346 = vsel %vm1282, %v1220, %v1314
      %v1347 = vsel %vm1283, %v1225, %v1315
      %v1348 = vsel %vm1284, %v1230, %v1316
      %v1349 = vsel %vm1285, %v1235, %v1317
      %v1350 = vsel %vm1286, %v1240, %v1318
      %v1351 = vsel %vm1287, %v1245, %v1319
      %v1352 = vsel %vm1288, %v1250, %v1320
      %v1353 = vsel %vm1289, %v1255, %v1321
      %v1354 = vld [vmem:[%s5] sm:$0xff]
      %v1355 = vld [vmem:[%s5 + $0x8] sm:$0xff]
      %v1356 = vld [vmem:[%s5 + $0x10] sm:$0xff]
      %v1357 = vld [vmem:[%s5 + $0x18] sm:$0xff]
      %v1358 = vld [vmem:[%s6] sm:$0x1]
      %v1360 = vlaneseq
      %v1361 = vshrl.u32 %v1360, 7
      %v1362 = vsub.s32 0, %v1361
      %v1363 = vrot.slane %v1358, %v1362
      %v1366 = vsel %vm381, %v1322, 0
      %v1369 = vsel %vm381, %v1323, 0
      %v1372 = vsel %vm381, %v1324, 0
      %v1375 = vsel %vm381, %v1325, 0
      %v1378 = vsel %vm381, %v1326, 0
      %v1381 = vsel %vm381, %v1327, 0
      %v1384 = vsel %vm381, %v1328, 0
      %v1387 = vsel %vm381, %v1329, 0
      %v1390 = vsel %vm381, %v1330, 0
      %v1393 = vsel %vm381, %v1331, 0
      %v1396 = vsel %vm381, %v1332, 0
      %v1399 = vsel %vm381, %v1333, 0
      %v1402 = vsel %vm381, %v1334, 0
      %v1405 = vsel %vm381, %v1335, 0
      %v1408 = vsel %vm381, %v1336, 0
      %v1411 = vsel %vm381, %v1337, 0
      %v1414 = vsel %vm381, %v1338, 0
      %v1417 = vsel %vm381, %v1339, 0
      %v1420 = vsel %vm381, %v1340, 0
      %v1423 = vsel %vm381, %v1341, 0
      %v1426 = vsel %vm381, %v1342, 0
      %v1429 = vsel %vm381, %v1343, 0
      %v1432 = vsel %vm381, %v1344, 0
      %v1435 = vsel %vm381, %v1345, 0
      %v1438 = vsel %vm381, %v1346, 0
      %v1441 = vsel %vm381, %v1347, 0
      %v1444 = vsel %vm381, %v1348, 0
      %v1447 = vsel %vm381, %v1349, 0
      %v1450 = vsel %vm381, %v1350, 0
      %v1453 = vsel %vm381, %v1351, 0
      %v1456 = vsel %vm381, %v1352, 0
      %v1459 = vsel %vm381, %v1353, 0
      %1461 = vmatprep.subr.mxu0 0.0
      %1462 = vmatpush1.msra.mxu0 %v1354
      %1463 = vmatprep.subr.mxu0 0.0
      %1464 = vmatpush1.msra.mxu0 %v1355
      %1465 = vmatprep.subr.mxu0 0.0
      %1466 = vmatpush1.msra.mxu0 %v1356
      %1467 = vmatprep.subr.mxu0 0.0
      %1468 = vmatpush1.msra.mxu0 %v1357
      %1469 = vmatprep.subr.mxu0 0.0
      %1470 = vmatpush1.msra.mxu0 0.0
      %1471 = vmatprep.subr.mxu0 0.0
      %1472 = vmatpush1.msra.mxu0 0.0
      %1473 = vmatprep.subr.mxu0 0.0
      %1474 = vmatpush1.msra.mxu0 0.0
      %1475 = vmatprep.subr.mxu0 0.0
      %1476 = vmatpush1.msra.mxu0 0.0
      %1477 = vmatprep.subr.mxu0 0.0
      %1478 = vmatpush1.msra.mxu0 0.0
      %1479 = vmatprep.subr.mxu0 0.0
      %1480 = vmatpush1.msra.mxu0 0.0
      %1481 = vmatprep.subr.mxu0 0.0
      %1482 = vmatpush1.msra.mxu0 0.0
      %1483 = vmatprep.subr.mxu0 0.0
      %1484 = vmatpush1.msra.mxu0 0.0
      %1485 = vmatprep.subr.mxu0 0.0
      %1486 = vmatpush1.msra.mxu0 0.0
      %1487 = vmatprep.subr.mxu0 0.0
      %1488 = vmatpush1.msra.mxu0 0.0
      %1489 = vmatprep.subr.mxu0 0.0
      %1490 = vmatpush1.msra.mxu0 0.0
      %1491 = vmatprep.subr.mxu0 0.0
      %1492 = vmatpush1.msra.mxu0 0.0
      %1493 = vmatprep.subr.mxu0 0.0
      %1494 = vmatpush1.msra.mxu0 0.0
      %1495 = vmatprep.subr.mxu0 0.0
      %1496 = vmatpush1.msra.mxu0 0.0
      %1497 = vmatprep.subr.mxu0 0.0
      %1498 = vmatpush1.msra.mxu0 0.0
      %1499 = vmatprep.subr.mxu0 0.0
      %1500 = vmatpush1.msra.mxu0 0.0
      %1501 = vmatprep.subr.mxu0 0.0
      %1502 = vmatpush1.msra.mxu0 0.0
      %1503 = vmatprep.subr.mxu0 0.0
      %1504 = vmatpush1.msra.mxu0 0.0
      %1505 = vmatprep.subr.mxu0 0.0
      %1506 = vmatpush1.msra.mxu0 0.0
      %1507 = vmatprep.subr.mxu0 0.0
      %1508 = vmatpush1.msra.mxu0 0.0
      %1509 = vmatprep.subr.mxu0 0.0
      %1510 = vmatpush1.msra.mxu0 0.0
      %1511 = vmatprep.subr.mxu0 0.0
      %1512 = vmatpush1.msra.mxu0 0.0
      %1513 = vmatprep.subr.mxu0 0.0
      %1514 = vmatpush1.msra.mxu0 0.0
      %1515 = vmatprep.subr.mxu0 0.0
      %1516 = vmatpush1.msra.mxu0 0.0
      %1517 = vmatprep.subr.mxu0 0.0
      %1518 = vmatpush1.msra.mxu0 0.0
      %1519 = vmatprep.subr.mxu0 0.0
      %1520 = vmatpush1.msra.mxu0 0.0
      %1521 = vmatprep.subr.mxu0 0.0
      %1522 = vmatpush1.msra.mxu0 0.0
      %1523 = vmatprep.subr.mxu0 0.0
      %1524 = vmatpush1.msra.mxu0 0.0
      %1525 = vmatprep.mubr.f32.mxu0 0.0
      %1526 = vmatmul.mubr.f32.gmra.mrb[0].mxu0 %v1366
      %v1527 = vpop.f32.mrb[0].mxu0
      %v1528 = vadd.f32 %v1363, %v1527
      %v1529 = vpop.f32.mrb[0].mxu0
      %1530 = vmatprep.mubr.f32.mxu0 0.0
      %1531 = vmatmul.mubr.f32.gmra.mrb[0].mxu0 %v1369
      %v1532 = vpop.f32.mrb[0].mxu0
      %v1533 = vadd.f32 %v1363, %v1532
      %v1534 = vpop.f32.mrb[0].mxu0
      %1535 = vmatprep.mubr.f32.mxu0 0.0
      %1536 = vmatmul.mubr.f32.gmra.mrb[0].mxu0 %v1372
      %v1537 = vpop.f32.mrb[0].mxu0
      %v1538 = vadd.f32 %v1363, %v1537
      %v1539 = vpop.f32.mrb[0].mxu0
      %1540 = vmatprep.mubr.f32.mxu0 0.0
      %1541 = vmatmul.mubr.f32.gmra.mrb[0].mxu0 %v1375
      %v1542 = vpop.f32.mrb[0].mxu0
      %v1543 = vadd.f32 %v1363, %v1542
      %v1544 = vpop.f32.mrb[0].mxu0
      %1545 = vmatprep.mubr.f32.mxu0 0.0
      %1546 = vmatmul.mubr.f32.gmra.mrb[0].mxu0 %v1378
      %v1547 = vpop.f32.mrb[0].mxu0
      %v1548 = vadd.f32 %v1363, %v1547
      %v1549 = vpop.f32.mrb[0].mxu0
      %1550 = vmatprep.mubr.f32.mxu0 0.0
      %1551 = vmatmul.mubr.f32.gmra.mrb[0].mxu0 %v1381
      %v1552 = vpop.f32.mrb[0].mxu0
      %v1553 = vadd.f32 %v1363, %v1552
      %v1554 = vpop.f32.mrb[0].mxu0
      %1555 = vmatprep.mubr.f32.mxu0 0.0
      %1556 = vmatmul.mubr.f32.gmra.mrb[0].mxu0 %v1384
      %v1557 = vpop.f32.mrb[0].mxu0
      %v1558 = vadd.f32 %v1363, %v1557
      %v1559 = vpop.f32.mrb[0].mxu0
      %1560 = vmatprep.mubr.f32.mxu0 0.0
      %1561 = vmatmul.mubr.f32.gmra.mrb[0].mxu0 %v1387
      %v1562 = vpop.f32.mrb[0].mxu0
      %v1563 = vadd.f32 %v1363, %v1562
      %v1564 = vpop.f32.mrb[0].mxu0
      %1565 = vmatprep.mubr.f32.mxu0 0.0
      %1566 = vmatmul.mubr.f32.gmra.mrb[0].mxu0 %v1390
      %v1567 = vpop.f32.mrb[0].mxu0
      %v1568 = vadd.f32 %v1363, %v1567
      %v1569 = vpop.f32.mrb[0].mxu0
      %1570 = vmatprep.mubr.f32.mxu0 0.0
      %1571 = vmatmul.mubr.f32.gmra.mrb[0].mxu0 %v1393
      %v1572 = vpop.f32.mrb[0].mxu0
      %v1573 = vadd.f32 %v1363, %v1572
      %v1574 = vpop.f32.mrb[0].mxu0
      %1575 = vmatprep.mubr.f32.mxu0 0.0
      %1576 = vmatmul.mubr.f32.gmra.mrb[0].mxu0 %v1396
      %v1577 = vpop.f32.mrb[0].mxu0
      %v1578 = vadd.f32 %v1363, %v1577
      %v1579 = vpop.f32.mrb[0].mxu0
      %1580 = vmatprep.mubr.f32.mxu0 0.0
      %1581 = vmatmul.mubr.f32.gmra.mrb[0].mxu0 %v1399
      %v1582 = vpop.f32.mrb[0].mxu0
      %v1583 = vadd.f32 %v1363, %v1582
      %v1584 = vpop.f32.mrb[0].mxu0
      %1585 = vmatprep.mubr.f32.mxu0 0.0
      %1586 = vmatmul.mubr.f32.gmra.mrb[0].mxu0 %v1402
      %v1587 = vpop.f32.mrb[0].mxu0
      %v1588 = vadd.f32 %v1363, %v1587
      %v1589 = vpop.f32.mrb[0].mxu0
      %1590 = vmatprep.mubr.f32.mxu0 0.0
      %1591 = vmatmul.mubr.f32.gmra.mrb[0].mxu0 %v1405
      %v1592 = vpop.f32.mrb[0].mxu0
      %v1593 = vadd.f32 %v1363, %v1592
      %v1594 = vpop.f32.mrb[0].mxu0
      %1595 = vmatprep.mubr.f32.mxu0 0.0
      %1596 = vmatmul.mubr.f32.gmra.mrb[0].mxu0 %v1408
      %v1597 = vpop.f32.mrb[0].mxu0
      %v1598 = vadd.f32 %v1363, %v1597
      %v1599 = vpop.f32.mrb[0].mxu0
      %1600 = vmatprep.mubr.f32.mxu0 0.0
      %1601 = vmatmul.mubr.f32.gmra.mrb[0].mxu0 %v1411
      %v1602 = vpop.f32.mrb[0].mxu0
      %v1603 = vadd.f32 %v1363, %v1602
      %v1604 = vpop.f32.mrb[0].mxu0
      %1605 = vmatprep.mubr.f32.mxu0 0.0
      %1606 = vmatmul.mubr.f32.gmra.mrb[0].mxu0 %v1414
      %v1607 = vpop.f32.mrb[0].mxu0
      %v1608 = vadd.f32 %v1363, %v1607
      %v1609 = vpop.f32.mrb[0].mxu0
      %1610 = vmatprep.mubr.f32.mxu0 0.0
      %1611 = vmatmul.mubr.f32.gmra.mrb[0].mxu0 %v1417
      %v1612 = vpop.f32.mrb[0].mxu0
      %v1613 = vadd.f32 %v1363, %v1612
      %v1614 = vpop.f32.mrb[0].mxu0
      %1615 = vmatprep.mubr.f32.mxu0 0.0
      %1616 = vmatmul.mubr.f32.gmra.mrb[0].mxu0 %v1420
      %v1617 = vpop.f32.mrb[0].mxu0
      %v1618 = vadd.f32 %v1363, %v1617
      %v1619 = vpop.f32.mrb[0].mxu0
      %1620 = vmatprep.mubr.f32.mxu0 0.0
      %1621 = vmatmul.mubr.f32.gmra.mrb[0].mxu0 %v1423
      %v1622 = vpop.f32.mrb[0].mxu0
      %v1623 = vadd.f32 %v1363, %v1622
      %v1624 = vpop.f32.mrb[0].mxu0
      %1625 = vmatprep.mubr.f32.mxu0 0.0
      %1626 = vmatmul.mubr.f32.gmra.mrb[0].mxu0 %v1426
      %v1627 = vpop.f32.mrb[0].mxu0
      %v1628 = vadd.f32 %v1363, %v1627
      %v1629 = vpop.f32.mrb[0].mxu0
      %1630 = vmatprep.mubr.f32.mxu0 0.0
      %1631 = vmatmul.mubr.f32.gmra.mrb[0].mxu0 %v1429
      %v1632 = vpop.f32.mrb[0].mxu0
      %v1633 = vadd.f32 %v1363, %v1632
      %v1634 = vpop.f32.mrb[0].mxu0
      %1635 = vmatprep.mubr.f32.mxu0 0.0
      %1636 = vmatmul.mubr.f32.gmra.mrb[0].mxu0 %v1432
      %v1637 = vpop.f32.mrb[0].mxu0
      %v1638 = vadd.f32 %v1363, %v1637
      %v1639 = vpop.f32.mrb[0].mxu0
      %1640 = vmatprep.mubr.f32.mxu0 0.0
      %1641 = vmatmul.mubr.f32.gmra.mrb[0].mxu0 %v1435
      %v1642 = vpop.f32.mrb[0].mxu0
      %v1643 = vadd.f32 %v1363, %v1642
      %v1644 = vpop.f32.mrb[0].mxu0
      %1645 = vmatprep.mubr.f32.mxu0 0.0
      %1646 = vmatmul.mubr.f32.gmra.mrb[0].mxu0 %v1438
      %v1647 = vpop.f32.mrb[0].mxu0
      %v1648 = vadd.f32 %v1363, %v1647
      %v1649 = vpop.f32.mrb[0].mxu0
      %1650 = vmatprep.mubr.f32.mxu0 0.0
      %1651 = vmatmul.mubr.f32.gmra.mrb[0].mxu0 %v1441
      %v1652 = vpop.f32.mrb[0].mxu0
      %v1653 = vadd.f32 %v1363, %v1652
      %v1654 = vpop.f32.mrb[0].mxu0
      %1655 = vmatprep.mubr.f32.mxu0 0.0
      %1656 = vmatmul.mubr.f32.gmra.mrb[0].mxu0 %v1444
      %v1657 = vpop.f32.mrb[0].mxu0
      %v1658 = vadd.f32 %v1363, %v1657
      %v1659 = vpop.f32.mrb[0].mxu0
      %1660 = vmatprep.mubr.f32.mxu0 0.0
      %1661 = vmatmul.mubr.f32.gmra.mrb[0].mxu0 %v1447
      %v1662 = vpop.f32.mrb[0].mxu0
      %v1663 = vadd.f32 %v1363, %v1662
      %v1664 = vpop.f32.mrb[0].mxu0
      %1665 = vmatprep.mubr.f32.mxu0 0.0
      %1666 = vmatmul.mubr.f32.gmra.mrb[0].mxu0 %v1450
      %v1667 = vpop.f32.mrb[0].mxu0
      %v1668 = vadd.f32 %v1363, %v1667
      %v1669 = vpop.f32.mrb[0].mxu0
      %1670 = vmatprep.mubr.f32.mxu0 0.0
      %1671 = vmatmul.mubr.f32.gmra.mrb[0].mxu0 %v1453
      %v1672 = vpop.f32.mrb[0].mxu0
      %v1673 = vadd.f32 %v1363, %v1672
      %v1674 = vpop.f32.mrb[0].mxu0
      %1675 = vmatprep.mubr.f32.mxu0 0.0
      %1676 = vmatmul.mubr.f32.gmra.mrb[0].mxu0 %v1456
      %v1677 = vpop.f32.mrb[0].mxu0
      %v1678 = vadd.f32 %v1363, %v1677
      %v1679 = vpop.f32.mrb[0].mxu0
      %1680 = vmatprep.mubr.f32.mxu0 0.0
      %1681 = vmatmul.mubr.f32.gmra.mrb[0].mxu0 %v1459
      %v1682 = vpop.f32.mrb[0].mxu0
      %v1683 = vadd.f32 %v1363, %v1682
      %v1684 = vpop.f32.mrb[0].mxu0
      %1685 = vdwg.mxu0
      %vm1686 = vcmp.ge.f32.partialorder %v1528, 0.0
      %vm1687 = vcmp.ge.f32.partialorder %v1533, 0.0
      %vm1688 = vcmp.ge.f32.partialorder %v1538, 0.0
      %vm1689 = vcmp.ge.f32.partialorder %v1543, 0.0
      %vm1690 = vcmp.ge.f32.partialorder %v1548, 0.0
      %vm1691 = vcmp.ge.f32.partialorder %v1553, 0.0
      %vm1692 = vcmp.ge.f32.partialorder %v1558, 0.0
      %vm1693 = vcmp.ge.f32.partialorder %v1563, 0.0
      %vm1694 = vcmp.ge.f32.partialorder %v1568, 0.0
      %vm1695 = vcmp.ge.f32.partialorder %v1573, 0.0
      %vm1696 = vcmp.ge.f32.partialorder %v1578, 0.0
      %vm1697 = vcmp.ge.f32.partialorder %v1583, 0.0
      %vm1698 = vcmp.ge.f32.partialorder %v1588, 0.0
      %vm1699 = vcmp.ge.f32.partialorder %v1593, 0.0
      %vm1700 = vcmp.ge.f32.partialorder %v1598, 0.0
      %vm1701 = vcmp.ge.f32.partialorder %v1603, 0.0
      %vm1702 = vcmp.ge.f32.partialorder %v1608, 0.0
      %vm1703 = vcmp.ge.f32.partialorder %v1613, 0.0
      %vm1704 = vcmp.ge.f32.partialorder %v1618, 0.0
      %vm1705 = vcmp.ge.f32.partialorder %v1623, 0.0
      %vm1706 = vcmp.ge.f32.partialorder %v1628, 0.0
      %vm1707 = vcmp.ge.f32.partialorder %v1633, 0.0
      %vm1708 = vcmp.ge.f32.partialorder %v1638, 0.0
      %vm1709 = vcmp.ge.f32.partialorder %v1643, 0.0
      %vm1710 = vcmp.ge.f32.partialorder %v1648, 0.0
      %vm1711 = vcmp.ge.f32.partialorder %v1653, 0.0
      %vm1712 = vcmp.ge.f32.partialorder %v1658, 0.0
      %vm1713 = vcmp.ge.f32.partialorder %v1663, 0.0
      %vm1714 = vcmp.ge.f32.partialorder %v1668, 0.0
      %vm1715 = vcmp.ge.f32.partialorder %v1673, 0.0
      %vm1716 = vcmp.ge.f32.partialorder %v1678, 0.0
      %vm1717 = vcmp.ge.f32.partialorder %v1683, 0.0
      %v1718 = vmul.f32 %v1528, 0.01
      %v1719 = vmul.f32 %v1533, 0.01
      %v1720 = vmul.f32 %v1538, 0.01
      %v1721 = vmul.f32 %v1543, 0.01
      %v1722 = vmul.f32 %v1548, 0.01
      %v1723 = vmul.f32 %v1553, 0.01
      %v1724 = vmul.f32 %v1558, 0.01
      %v1725 = vmul.f32 %v1563, 0.01
      %v1726 = vmul.f32 %v1568, 0.01
      %v1727 = vmul.f32 %v1573, 0.01
      %v1728 = vmul.f32 %v1578, 0.01
      %v1729 = vmul.f32 %v1583, 0.01
      %v1730 = vmul.f32 %v1588, 0.01
      %v1731 = vmul.f32 %v1593, 0.01
      %v1732 = vmul.f32 %v1598, 0.01
      %v1733 = vmul.f32 %v1603, 0.01
      %v1734 = vmul.f32 %v1608, 0.01
      %v1735 = vmul.f32 %v1613, 0.01
      %v1736 = vmul.f32 %v1618, 0.01
      %v1737 = vmul.f32 %v1623, 0.01
      %v1738 = vmul.f32 %v1628, 0.01
      %v1739 = vmul.f32 %v1633, 0.01
      %v1740 = vmul.f32 %v1638, 0.01
      %v1741 = vmul.f32 %v1643, 0.01
      %v1742 = vmul.f32 %v1648, 0.01
      %v1743 = vmul.f32 %v1653, 0.01
      %v1744 = vmul.f32 %v1658, 0.01
      %v1745 = vmul.f32 %v1663, 0.01
      %v1746 = vmul.f32 %v1668, 0.01
      %v1747 = vmul.f32 %v1673, 0.01
      %v1748 = vmul.f32 %v1678, 0.01
      %v1749 = vmul.f32 %v1683, 0.01
      %v1750 = vsel %vm1686, %v1528, %v1718
      %v1751 = vsel %vm1687, %v1533, %v1719
      %v1752 = vsel %vm1688, %v1538, %v1720
      %v1753 = vsel %vm1689, %v1543, %v1721
      %v1754 = vsel %vm1690, %v1548, %v1722
      %v1755 = vsel %vm1691, %v1553, %v1723
      %v1756 = vsel %vm1692, %v1558, %v1724
      %v1757 = vsel %vm1693, %v1563, %v1725
      %v1758 = vsel %vm1694, %v1568, %v1726
      %v1759 = vsel %vm1695, %v1573, %v1727
      %v1760 = vsel %vm1696, %v1578, %v1728
      %v1761 = vsel %vm1697, %v1583, %v1729
      %v1762 = vsel %vm1698, %v1588, %v1730
      %v1763 = vsel %vm1699, %v1593, %v1731
      %v1764 = vsel %vm1700, %v1598, %v1732
      %v1765 = vsel %vm1701, %v1603, %v1733
      %v1766 = vsel %vm1702, %v1608, %v1734
      %v1767 = vsel %vm1703, %v1613, %v1735
      %v1768 = vsel %vm1704, %v1618, %v1736
      %v1769 = vsel %vm1705, %v1623, %v1737
      %v1770 = vsel %vm1706, %v1628, %v1738
      %v1771 = vsel %vm1707, %v1633, %v1739
      %v1772 = vsel %vm1708, %v1638, %v1740
      %v1773 = vsel %vm1709, %v1643, %v1741
      %v1774 = vsel %vm1710, %v1648, %v1742
      %v1775 = vsel %vm1711, %v1653, %v1743
      %v1776 = vsel %vm1712, %v1658, %v1744
      %v1777 = vsel %vm1713, %v1663, %v1745
      %v1778 = vsel %vm1714, %v1668, %v1746
      %v1779 = vsel %vm1715, %v1673, %v1747
      %v1780 = vsel %vm1716, %v1678, %v1748
      %v1781 = vsel %vm1717, %v1683, %v1749
      %v1782 = vld [vmem:[%s7] sm:$0x1]
      %v1784 = vlaneseq
      %v1785 = vshrl.u32 %v1784, 7
      %v1786 = vsub.s32 0, %v1785
      %v1787 = vrot.slane %v1782, %v1786
      %v1789 = vmul.f32 %v1750, %v1787
      %v1790 = vmul.f32 %v1751, %v1787
      %v1791 = vmul.f32 %v1752, %v1787
      %v1792 = vmul.f32 %v1753, %v1787
      %v1793 = vmul.f32 %v1754, %v1787
      %v1794 = vmul.f32 %v1755, %v1787
      %v1795 = vmul.f32 %v1756, %v1787
      %v1796 = vmul.f32 %v1757, %v1787
      %v1797 = vmul.f32 %v1758, %v1787
      %v1798 = vmul.f32 %v1759, %v1787
      %v1799 = vmul.f32 %v1760, %v1787
      %v1800 = vmul.f32 %v1761, %v1787
      %v1801 = vmul.f32 %v1762, %v1787
      %v1802 = vmul.f32 %v1763, %v1787
      %v1803 = vmul.f32 %v1764, %v1787
      %v1804 = vmul.f32 %v1765, %v1787
      %v1805 = vmul.f32 %v1766, %v1787
      %v1806 = vmul.f32 %v1767, %v1787
      %v1807 = vmul.f32 %v1768, %v1787
      %v1808 = vmul.f32 %v1769, %v1787
      %v1809 = vmul.f32 %v1770, %v1787
      %v1810 = vmul.f32 %v1771, %v1787
      %v1811 = vmul.f32 %v1772, %v1787
      %v1812 = vmul.f32 %v1773, %v1787
      %v1813 = vmul.f32 %v1774, %v1787
      %v1814 = vmul.f32 %v1775, %v1787
      %v1815 = vmul.f32 %v1776, %v1787
      %v1816 = vmul.f32 %v1777, %v1787
      %v1817 = vmul.f32 %v1778, %v1787
      %v1818 = vmul.f32 %v1779, %v1787
      %v1819 = vmul.f32 %v1780, %v1787
      %v1820 = vmul.f32 %v1781, %v1787
      %v1821 = vsel %vm936, %v1789, 0.0
      %1822 = vadd.xlane.f32.xlu0 %v1821
      %v1823 = vpop.xlane.xlu0 %1822
      %v1824 = vsel %vm936, %v1790, 0.0
      %1825 = vadd.xlane.f32.xlu0 %v1824
      %v1826 = vpop.xlane.xlu0 %1825
      %v1827 = vsel %vm936, %v1791, 0.0
      %1828 = vadd.xlane.f32.xlu0 %v1827
      %v1829 = vpop.xlane.xlu0 %1828
      %v1830 = vsel %vm936, %v1792, 0.0
      %1831 = vadd.xlane.f32.xlu0 %v1830
      %v1832 = vpop.xlane.xlu0 %1831
      %v1833 = vsel %vm936, %v1793, 0.0
      %1834 = vadd.xlane.f32.xlu0 %v1833
      %v1835 = vpop.xlane.xlu0 %1834
      %v1836 = vsel %vm936, %v1794, 0.0
      %1837 = vadd.xlane.f32.xlu0 %v1836
      %v1838 = vpop.xlane.xlu0 %1837
      %v1839 = vsel %vm936, %v1795, 0.0
      %1840 = vadd.xlane.f32.xlu0 %v1839
      %v1841 = vpop.xlane.xlu0 %1840
      %v1842 = vsel %vm936, %v1796, 0.0
      %1843 = vadd.xlane.f32.xlu0 %v1842
      %v1844 = vpop.xlane.xlu0 %1843
      %v1845 = vsel %vm936, %v1797, 0.0
      %1846 = vadd.xlane.f32.xlu0 %v1845
      %v1847 = vpop.xlane.xlu0 %1846
      %v1848 = vsel %vm936, %v1798, 0.0
      %1849 = vadd.xlane.f32.xlu0 %v1848
      %v1850 = vpop.xlane.xlu0 %1849
      %v1851 = vsel %vm936, %v1799, 0.0
      %1852 = vadd.xlane.f32.xlu0 %v1851
      %v1853 = vpop.xlane.xlu0 %1852
      %v1854 = vsel %vm936, %v1800, 0.0
      %1855 = vadd.xlane.f32.xlu0 %v1854
      %v1856 = vpop.xlane.xlu0 %1855
      %v1857 = vsel %vm936, %v1801, 0.0
      %1858 = vadd.xlane.f32.xlu0 %v1857
      %v1859 = vpop.xlane.xlu0 %1858
      %v1860 = vsel %vm936, %v1802, 0.0
      %1861 = vadd.xlane.f32.xlu0 %v1860
      %v1862 = vpop.xlane.xlu0 %1861
      %v1863 = vsel %vm936, %v1803, 0.0
      %1864 = vadd.xlane.f32.xlu0 %v1863
      %v1865 = vpop.xlane.xlu0 %1864
      %v1866 = vsel %vm936, %v1804, 0.0
      %1867 = vadd.xlane.f32.xlu0 %v1866
      %v1868 = vpop.xlane.xlu0 %1867
      %v1869 = vsel %vm936, %v1805, 0.0
      %1870 = vadd.xlane.f32.xlu0 %v1869
      %v1871 = vpop.xlane.xlu0 %1870
      %v1872 = vsel %vm936, %v1806, 0.0
      %1873 = vadd.xlane.f32.xlu0 %v1872
      %v1874 = vpop.xlane.xlu0 %1873
      %v1875 = vsel %vm936, %v1807, 0.0
      %1876 = vadd.xlane.f32.xlu0 %v1875
      %v1877 = vpop.xlane.xlu0 %1876
      %v1878 = vsel %vm936, %v1808, 0.0
      %1879 = vadd.xlane.f32.xlu0 %v1878
      %v1880 = vpop.xlane.xlu0 %1879
      %v1881 = vsel %vm936, %v1809, 0.0
      %1882 = vadd.xlane.f32.xlu0 %v1881
      %v1883 = vpop.xlane.xlu0 %1882
      %v1884 = vsel %vm936, %v1810, 0.0
      %1885 = vadd.xlane.f32.xlu0 %v1884
      %v1886 = vpop.xlane.xlu0 %1885
      %v1887 = vsel %vm936, %v1811, 0.0
      %1888 = vadd.xlane.f32.xlu0 %v1887
      %v1889 = vpop.xlane.xlu0 %1888
      %v1890 = vsel %vm936, %v1812, 0.0
      %1891 = vadd.xlane.f32.xlu0 %v1890
      %v1892 = vpop.xlane.xlu0 %1891
      %v1893 = vsel %vm936, %v1813, 0.0
      %1894 = vadd.xlane.f32.xlu0 %v1893
      %v1895 = vpop.xlane.xlu0 %1894
      %v1896 = vsel %vm936, %v1814, 0.0
      %1897 = vadd.xlane.f32.xlu0 %v1896
      %v1898 = vpop.xlane.xlu0 %1897
      %v1899 = vsel %vm936, %v1815, 0.0
      %1900 = vadd.xlane.f32.xlu0 %v1899
      %v1901 = vpop.xlane.xlu0 %1900
      %v1902 = vsel %vm936, %v1816, 0.0
      %1903 = vadd.xlane.f32.xlu0 %v1902
      %v1904 = vpop.xlane.xlu0 %1903
      %v1905 = vsel %vm936, %v1817, 0.0
      %1906 = vadd.xlane.f32.xlu0 %v1905
      %v1907 = vpop.xlane.xlu0 %1906
      %v1908 = vsel %vm936, %v1818, 0.0
      %1909 = vadd.xlane.f32.xlu0 %v1908
      %v1910 = vpop.xlane.xlu0 %1909
      %v1911 = vsel %vm936, %v1819, 0.0
      %1912 = vadd.xlane.f32.xlu0 %v1911
      %v1913 = vpop.xlane.xlu0 %1912
      %v1914 = vsel %vm936, %v1820, 0.0
      %1915 = vadd.xlane.f32.xlu0 %v1914
      %v1916 = vpop.xlane.xlu0 %1915
      %v1917 = vld [vmem:[#allocation2] sm:$0x1]
      %v1919 = vlaneseq
      %v1920 = vshrl.u32 %v1919, 7
      %v1921 = vsub.s32 0, %v1920
      %v1922 = vrot.slane %v1917, %v1921
      %v1924 = vadd.f32 %v1823, %v1922
      %v1925 = vadd.f32 %v1826, %v1922
      %v1926 = vadd.f32 %v1829, %v1922
      %v1927 = vadd.f32 %v1832, %v1922
      %v1928 = vadd.f32 %v1835, %v1922
      %v1929 = vadd.f32 %v1838, %v1922
      %v1930 = vadd.f32 %v1841, %v1922
      %v1931 = vadd.f32 %v1844, %v1922
      %v1932 = vadd.f32 %v1847, %v1922
      %v1933 = vadd.f32 %v1850, %v1922
      %v1934 = vadd.f32 %v1853, %v1922
      %v1935 = vadd.f32 %v1856, %v1922
      %v1936 = vadd.f32 %v1859, %v1922
      %v1937 = vadd.f32 %v1862, %v1922
      %v1938 = vadd.f32 %v1865, %v1922
      %v1939 = vadd.f32 %v1868, %v1922
      %v1940 = vadd.f32 %v1871, %v1922
      %v1941 = vadd.f32 %v1874, %v1922
      %v1942 = vadd.f32 %v1877, %v1922
      %v1943 = vadd.f32 %v1880, %v1922
      %v1944 = vadd.f32 %v1883, %v1922
      %v1945 = vadd.f32 %v1886, %v1922
      %v1946 = vadd.f32 %v1889, %v1922
      %v1947 = vadd.f32 %v1892, %v1922
      %v1948 = vadd.f32 %v1895, %v1922
      %v1949 = vadd.f32 %v1898, %v1922
      %v1950 = vadd.f32 %v1901, %v1922
      %v1951 = vadd.f32 %v1904, %v1922
      %v1952 = vadd.f32 %v1907, %v1922
      %v1953 = vadd.f32 %v1910, %v1922
      %v1954 = vadd.f32 %v1913, %v1922
      %v1955 = vadd.f32 %v1916, %v1922
      %v1956 = vxor.u32 %v1924, 2147483648
      %v1957 = vxor.u32 %v1925, 2147483648
      %v1958 = vxor.u32 %v1926, 2147483648
      %v1959 = vxor.u32 %v1927, 2147483648
      %v1960 = vxor.u32 %v1928, 2147483648
      %v1961 = vxor.u32 %v1929, 2147483648
      %v1962 = vxor.u32 %v1930, 2147483648
      %v1963 = vxor.u32 %v1931, 2147483648
      %v1964 = vxor.u32 %v1932, 2147483648
      %v1965 = vxor.u32 %v1933, 2147483648
      %v1966 = vxor.u32 %v1934, 2147483648
      %v1967 = vxor.u32 %v1935, 2147483648
      %v1968 = vxor.u32 %v1936, 2147483648
      %v1969 = vxor.u32 %v1937, 2147483648
      %v1970 = vxor.u32 %v1938, 2147483648
      %v1971 = vxor.u32 %v1939, 2147483648
      %v1972 = vxor.u32 %v1940, 2147483648
      %v1973 = vxor.u32 %v1941, 2147483648
      %v1974 = vxor.u32 %v1942, 2147483648
      %v1975 = vxor.u32 %v1943, 2147483648
      %v1976 = vxor.u32 %v1944, 2147483648
      %v1977 = vxor.u32 %v1945, 2147483648
      %v1978 = vxor.u32 %v1946, 2147483648
      %v1979 = vxor.u32 %v1947, 2147483648
      %v1980 = vxor.u32 %v1948, 2147483648
      %v1981 = vxor.u32 %v1949, 2147483648
      %v1982 = vxor.u32 %v1950, 2147483648
      %v1983 = vxor.u32 %v1951, 2147483648
      %v1984 = vxor.u32 %v1952, 2147483648
      %v1985 = vxor.u32 %v1953, 2147483648
      %v1986 = vxor.u32 %v1954, 2147483648
      %v1987 = vxor.u32 %v1955, 2147483648
      %v1988 = vmul.f32 %v1956, 1.442695
      %v1989 = vpow.pop %v1988
      %v1990 = vmul.f32 %v1957, 1.442695
      %v1991 = vpow.pop %v1990
      %v1992 = vmul.f32 %v1958, 1.442695
      %v1993 = vpow.pop %v1992
      %v1994 = vmul.f32 %v1959, 1.442695
      %v1995 = vpow.pop %v1994
      %v1996 = vmul.f32 %v1960, 1.442695
      %v1997 = vpow.pop %v1996
      %v1998 = vmul.f32 %v1961, 1.442695
      %v1999 = vpow.pop %v1998
      %v2000 = vmul.f32 %v1962, 1.442695
      %v2001 = vpow.pop %v2000
      %v2002 = vmul.f32 %v1963, 1.442695
      %v2003 = vpow.pop %v2002
      %v2004 = vmul.f32 %v1964, 1.442695
      %v2005 = vpow.pop %v2004
      %v2006 = vmul.f32 %v1965, 1.442695
      %v2007 = vpow.pop %v2006
      %v2008 = vmul.f32 %v1966, 1.442695
      %v2009 = vpow.pop %v2008
      %v2010 = vmul.f32 %v1967, 1.442695
      %v2011 = vpow.pop %v2010
      %v2012 = vmul.f32 %v1968, 1.442695
      %v2013 = vpow.pop %v2012
      %v2014 = vmul.f32 %v1969, 1.442695
      %v2015 = vpow.pop %v2014
      %v2016 = vmul.f32 %v1970, 1.442695
      %v2017 = vpow.pop %v2016
      %v2018 = vmul.f32 %v1971, 1.442695
      %v2019 = vpow.pop %v2018
      %v2020 = vmul.f32 %v1972, 1.442695
      %v2021 = vpow.pop %v2020
      %v2022 = vmul.f32 %v1973, 1.442695
      %v2023 = vpow.pop %v2022
      %v2024 = vmul.f32 %v1974, 1.442695
      %v2025 = vpow.pop %v2024
      %v2026 = vmul.f32 %v1975, 1.442695
      %v2027 = vpow.pop %v2026
      %v2028 = vmul.f32 %v1976, 1.442695
      %v2029 = vpow.pop %v2028
      %v2030 = vmul.f32 %v1977, 1.442695
      %v2031 = vpow.pop %v2030
      %v2032 = vmul.f32 %v1978, 1.442695
      %v2033 = vpow.pop %v2032
      %v2034 = vmul.f32 %v1979, 1.442695
      %v2035 = vpow.pop %v2034
      %v2036 = vmul.f32 %v1980, 1.442695
      %v2037 = vpow.pop %v2036
      %v2038 = vmul.f32 %v1981, 1.442695
      %v2039 = vpow.pop %v2038
      %v2040 = vmul.f32 %v1982, 1.442695
      %v2041 = vpow.pop %v2040
      %v2042 = vmul.f32 %v1983, 1.442695
      %v2043 = vpow.pop %v2042
      %v2044 = vmul.f32 %v1984, 1.442695
      %v2045 = vpow.pop %v2044
      %v2046 = vmul.f32 %v1985, 1.442695
      %v2047 = vpow.pop %v2046
      %v2048 = vmul.f32 %v1986, 1.442695
      %v2049 = vpow.pop %v2048
      %v2050 = vmul.f32 %v1987, 1.442695
      %v2051 = vpow.pop %v2050
      %v2052 = vadd.f32 %v1989, 1.0
      %v2053 = vadd.f32 %v1991, 1.0
      %v2054 = vadd.f32 %v1993, 1.0
      %v2055 = vadd.f32 %v1995, 1.0
      %v2056 = vadd.f32 %v1997, 1.0
      %v2057 = vadd.f32 %v1999, 1.0
      %v2058 = vadd.f32 %v2001, 1.0
      %v2059 = vadd.f32 %v2003, 1.0
      %v2060 = vadd.f32 %v2005, 1.0
      %v2061 = vadd.f32 %v2007, 1.0
      %v2062 = vadd.f32 %v2009, 1.0
      %v2063 = vadd.f32 %v2011, 1.0
      %v2064 = vadd.f32 %v2013, 1.0
      %v2065 = vadd.f32 %v2015, 1.0
      %v2066 = vadd.f32 %v2017, 1.0
      %v2067 = vadd.f32 %v2019, 1.0
      %v2068 = vadd.f32 %v2021, 1.0
      %v2069 = vadd.f32 %v2023, 1.0
      %v2070 = vadd.f32 %v2025, 1.0
      %v2071 = vadd.f32 %v2027, 1.0
      %v2072 = vadd.f32 %v2029, 1.0
      %v2073 = vadd.f32 %v2031, 1.0
      %v2074 = vadd.f32 %v2033, 1.0
      %v2075 = vadd.f32 %v2035, 1.0
      %v2076 = vadd.f32 %v2037, 1.0
      %v2077 = vadd.f32 %v2039, 1.0
      %v2078 = vadd.f32 %v2041, 1.0
      %v2079 = vadd.f32 %v2043, 1.0
      %v2080 = vadd.f32 %v2045, 1.0
      %v2081 = vadd.f32 %v2047, 1.0
      %v2082 = vadd.f32 %v2049, 1.0
      %v2083 = vadd.f32 %v2051, 1.0
      %v2084 = vrcp.pop %v2052
      %v2085 = vmul.f32 1.0, %v2084
      %v2086 = vrcp.pop %v2053
      %v2087 = vmul.f32 1.0, %v2086
      %v2088 = vrcp.pop %v2054
      %v2089 = vmul.f32 1.0, %v2088
      %v2090 = vrcp.pop %v2055
      %v2091 = vmul.f32 1.0, %v2090
      %v2092 = vrcp.pop %v2056
      %v2093 = vmul.f32 1.0, %v2092
      %v2094 = vrcp.pop %v2057
      %v2095 = vmul.f32 1.0, %v2094
      %v2096 = vrcp.pop %v2058
      %v2097 = vmul.f32 1.0, %v2096
      %v2098 = vrcp.pop %v2059
      %v2099 = vmul.f32 1.0, %v2098
      %v2100 = vrcp.pop %v2060
      %v2101 = vmul.f32 1.0, %v2100
      %v2102 = vrcp.pop %v2061
      %v2103 = vmul.f32 1.0, %v2102
      %v2104 = vrcp.pop %v2062
      %v2105 = vmul.f32 1.0, %v2104
      %v2106 = vrcp.pop %v2063
      %v2107 = vmul.f32 1.0, %v2106
      %v2108 = vrcp.pop %v2064
      %v2109 = vmul.f32 1.0, %v2108
      %v2110 = vrcp.pop %v2065
      %v2111 = vmul.f32 1.0, %v2110
      %v2112 = vrcp.pop %v2066
      %v2113 = vmul.f32 1.0, %v2112
      %v2114 = vrcp.pop %v2067
      %v2115 = vmul.f32 1.0, %v2114
      %v2116 = vrcp.pop %v2068
      %v2117 = vmul.f32 1.0, %v2116
      %v2118 = vrcp.pop %v2069
      %v2119 = vmul.f32 1.0, %v2118
      %v2120 = vrcp.pop %v2070
      %v2121 = vmul.f32 1.0, %v2120
      %v2122 = vrcp.pop %v2071
      %v2123 = vmul.f32 1.0, %v2122
      %v2124 = vrcp.pop %v2072
      %v2125 = vmul.f32 1.0, %v2124
      %v2126 = vrcp.pop %v2073
      %v2127 = vmul.f32 1.0, %v2126
      %v2128 = vrcp.pop %v2074
      %v2129 = vmul.f32 1.0, %v2128
      %v2130 = vrcp.pop %v2075
      %v2131 = vmul.f32 1.0, %v2130
      %v2132 = vrcp.pop %v2076
      %v2133 = vmul.f32 1.0, %v2132
      %v2134 = vrcp.pop %v2077
      %v2135 = vmul.f32 1.0, %v2134
      %v2136 = vrcp.pop %v2078
      %v2137 = vmul.f32 1.0, %v2136
      %v2138 = vrcp.pop %v2079
      %v2139 = vmul.f32 1.0, %v2138
      %v2140 = vrcp.pop %v2080
      %v2141 = vmul.f32 1.0, %v2140
      %v2142 = vrcp.pop %v2081
      %v2143 = vmul.f32 1.0, %v2142
      %v2144 = vrcp.pop %v2082
      %v2145 = vmul.f32 1.0, %v2144
      %v2146 = vrcp.pop %v2083
      %v2147 = vmul.f32 1.0, %v2146
      %vm2148 = vcmask 7168
      %2149 = vst.msk [vmem:[%s336] sm:$0xff] %vm2148, %v2085
      %2150 = vst.msk [vmem:[%s336 + $0x8] sm:$0xff] %vm2148, %v2087
      %2151 = vst.msk [vmem:[%s336 + $0x10] sm:$0xff] %vm2148, %v2089
      %2152 = vst.msk [vmem:[%s336 + $0x18] sm:$0xff] %vm2148, %v2091
      %2153 = vst.msk [vmem:[%s336 + $0x20] sm:$0xff] %vm2148, %v2093
      %2154 = vst.msk [vmem:[%s336 + $0x28] sm:$0xff] %vm2148, %v2095
      %2155 = vst.msk [vmem:[%s336 + $0x30] sm:$0xff] %vm2148, %v2097
      %2156 = vst.msk [vmem:[%s336 + $0x38] sm:$0xff] %vm2148, %v2099
      %2157 = vst.msk [vmem:[%s336 + $0x40] sm:$0xff] %vm2148, %v2101
      %2158 = vst.msk [vmem:[%s336 + $0x48] sm:$0xff] %vm2148, %v2103
      %2159 = vst.msk [vmem:[%s336 + $0x50] sm:$0xff] %vm2148, %v2105
      %2160 = vst.msk [vmem:[%s336 + $0x58] sm:$0xff] %vm2148, %v2107
      %2161 = vst.msk [vmem:[%s336 + $0x60] sm:$0xff] %vm2148, %v2109
      %2162 = vst.msk [vmem:[%s336 + $0x68] sm:$0xff] %vm2148, %v2111
      %2163 = vst.msk [vmem:[%s336 + $0x70] sm:$0xff] %vm2148, %v2113
      %2164 = vst.msk [vmem:[%s336 + $0x78] sm:$0xff] %vm2148, %v2115
      %2165 = vst.msk [vmem:[%s336 + $0x80] sm:$0xff] %vm2148, %v2117
      %2166 = vst.msk [vmem:[%s336 + $0x88] sm:$0xff] %vm2148, %v2119
      %2167 = vst.msk [vmem:[%s336 + $0x90] sm:$0xff] %vm2148, %v2121
      %2168 = vst.msk [vmem:[%s336 + $0x98] sm:$0xff] %vm2148, %v2123
      %2169 = vst.msk [vmem:[%s336 + $0xa0] sm:$0xff] %vm2148, %v2125
      %2170 = vst.msk [vmem:[%s336 + $0xa8] sm:$0xff] %vm2148, %v2127
      %2171 = vst.msk [vmem:[%s336 + $0xb0] sm:$0xff] %vm2148, %v2129
      %2172 = vst.msk [vmem:[%s336 + $0xb8] sm:$0xff] %vm2148, %v2131
      %2173 = vst.msk [vmem:[%s336 + $0xc0] sm:$0xff] %vm2148, %v2133
      %2174 = vst.msk [vmem:[%s336 + $0xc8] sm:$0xff] %vm2148, %v2135
      %2175 = vst.msk [vmem:[%s336 + $0xd0] sm:$0xff] %vm2148, %v2137
      %2176 = vst.msk [vmem:[%s336 + $0xd8] sm:$0xff] %vm2148, %v2139
      %2177 = vst.msk [vmem:[%s336 + $0xe0] sm:$0xff] %vm2148, %v2141
      %2178 = vst.msk [vmem:[%s336 + $0xe8] sm:$0xff] %vm2148, %v2143
      %2179 = vst.msk [vmem:[%s336 + $0xf0] sm:$0xff] %vm2148, %v2145
      %2180 = vst.msk [vmem:[%s336 + $0xf8] sm:$0xff] %vm2148, %v2147
      %s2181 = smul.u32 32, %s22
      %p2182 = scmp.lt.s32.totalorder %s2181, 95
      %s2183 = scalar_select %p2182, %s2181, 95
      %s2184 = smul.addr %s2183, 8
      %s2185 = scalar_lea.vmem %s9, %s2184
      // Predicated region
      $region57: #{tpu_custom_call.1} parent=55 // pred_check
        %p2186 = pneg %p234
      $region58: #{tpu_custom_call.1} parent=55 // pred_check_branch
        %2188 = sbr.rel (%p2186) target = $region60
      $region59: #{tpu_custom_call.1} parent=55 // pred_region
        %s2189 = smul.u32 32, %s22
      $region60: #{tpu_custom_call.1} parent=55 // pred_fallthru
        _
    $region56: #{tpu_custom_call.1} parent=5 // pred_fallthru
      _
    %p2190 = scmp.le.s32.totalorder 2, %s17
    // Predicated region
    $region61: #{tpu_custom_call.1} parent=5 // pred_check
      %p2191 = pneg %p2190
    $region62: #{tpu_custom_call.1} parent=5 // pred_check_branch
      %2193 = sbr.rel (%p2191) target = $region64
    $region63: #{tpu_custom_call.1} parent=5 // pred_region
      %s2194 = ssub.s32 %s17, 2
      // Predicated region
      $region65: #{tpu_custom_call.1} parent=63 // pred_check
        %p2195 = pneg %p240
      $region66: #{tpu_custom_call.1} parent=63 // pred_check_branch
        %2197 = sbr.rel (%p2195) target = $region68
      $region67: #{tpu_custom_call.1} parent=63 // pred_region
        %s2198 = smul.u32 32, %s23
        %p2199 = scmp.lt.s32.totalorder %s2198, 95
        %s2200 = scalar_select %p2199, %s2198, 95
        %s2201 = smul.addr %s2200, 8
        %s2202 = scalar_lea.vmem %s9, %s2201
      $region68: #{tpu_custom_call.1} parent=63 // pred_fallthru
        _
    $region64: #{tpu_custom_call.1} parent=5 // pred_fallthru
      _
  $region6: #{tpu_custom_call.1} parent=0 // loop_footer
    %s21 = sadd.s32 1, %s17
  $region7: #{tpu_custom_call.1} parent=0 // loop_footer_branch
    %16 = sbr.rel target = $region3
  $region8: #{tpu_custom_call.1} parent=0 // loop_exit
    _

</llo_original>
